<compile_context>
chip_gen: v7x
topology: tpu7x:2x2x1
jax: 0.10.0
libtpu: 0.0.40
codegen_flags: <defaults>
</compile_context>

<pallas_src>
import functools
from math import isqrt

import jax
import jax.numpy as jnp
from jax.experimental import pallas as pl
from jax.experimental.pallas import tpu as pltpu


# ---------------- shared ConvTranspose2d math (pre-activation) ---------------

def _convt_pre(x, w, b, stride, padding):
    """PyTorch ConvTranspose2d, pre-activation. x:(N,Cin,H,W) w:(Cin,Cout,K,K)."""
    B, Cin, H, W = x.shape
    _, Cout, K, _ = w.shape
    Hf = (H - 1) * stride + K
    Wf = (W - 1) * stride + K
    y = jnp.zeros((B, Cout, Hf, Wf), jnp.float32)
    for kh in range(K):
        for kw in range(K):
            contrib = jnp.einsum("bchw,cd->bdhw", x, w[:, :, kh, kw])
            y = y.at[:, :,
                     kh:kh + (H - 1) * stride + 1:stride,
                     kw:kw + (W - 1) * stride + 1:stride].add(contrib)
    y = y[:, :, padding:Hf - padding, padding:Wf - padding]
    if b is not None:
        y = y + b.reshape(1, -1, 1, 1)
    return y


# ---------------- Fused Pallas kernel ----------------------------------------

def _shifted(xi, s, n):
    """Window shifted left by s along the flat axis: out[j] = xi[j + s].

    Lane roll on the XLU when the flat width is 128-aligned (default: 1024);
    the wrapped tail is never read because valid output indices stay in range.
    """
    if s == 0:
        return xi
    if n % 128 == 0:
        return pltpu.roll(xi, n - s, axis=1)      # jnp.roll semantics
    # TODO(synk): non-128-multiple padded widths fall back to slice+concat.
    return jnp.concatenate([xi[:, s:], xi[:, :s]], axis=1)


def _decoder_kernel(x_ref, fcw_ref, fcb_ref, cw_ref, cb_ref, o_ref, *scratch,
                    layers):
    """Whole CNNDecoder forward in one kernel invocation (no grid).

    x_ref   : (B, latent)                      VMEM
    fcw_ref : (latent, C1*Hp1*Wp1)             VMEM  fc weight with conv layer 0
                                                     folded in + zero halo cols
    fcb_ref : (1, C1*Hp1*Wp1)                  VMEM  matching folded bias row
    cw_ref  : (sum_{l>=1} Co*Ci*K*K,) or (1,)  SMEM  flipped conv weights, flat
    cb_ref  : (sum_{l>=1} Co,) or (1,)         SMEM  conv biases, flat
    o_ref   : (B, Cout_last*Hp_last*Wp_last)   VMEM  lane-dense slab (wrapper
                                                     crops the valid interior)
    scratch : (B, Cin_l, Hp_l*Wp_l) VMEM per intermediate remaining layer
              (only allocated for >= 3 conv layers)
    layers  : static tuple of remaining (non-folded) conv layers,
              each (Cin, Cout, K, pad, Hin, Win, Hout, Wout).
    """
    # FC (+ folded ConvTranspose2d layer 0): one MXU matmul producing the
    # first remaining layer's padded, flat, pre-activation input.  The halo
    # columns are zero weight/bias columns and ReLU keeps them zero.
    h = (jnp.dot(x_ref[...], fcw_ref[...], preferred_element_type=jnp.float32)
         + fcb_ref[...])
    h = jnp.maximum(h, 0.0)                       # activation of folded layer

    if not layers:                                # single-conv configs
        o_ref[...] = h
        return

    n_rem = len(layers)
    w_off = 0
    b_off = 0
    for l, (cin, cout, k, pad, hin, win, hout, wout) in enumerate(layers):
        pe = k - 1 - pad
        hp, wp = hin + 2 * pe, win + 2 * pe
        hpwp = hp * wp
        last = l == n_rem - 1

        if l == 0:
            chans = [h[:, ci * hpwp:(ci + 1) * hpwp] for ci in range(cin)]
        else:
            xin = scratch[l - 1][...]             # (B, cin, hpwp)
            chans = [xin[:, ci, :] for ci in range(cin)]

        # Shifted tap windows, hoisted out of the co loop (reused cout times).
        # TODO(synk): once cin*cout*K*K grows beyond the 1-channel default,
        # switch to an im2col matmul on the MXU (weights staged in VMEM as
        # (cin*K*K, cout)) instead of per-tap SMEM-scalar broadcast MACs.
        windows = []
        for ci in range(cin):
            for kh in range(k):
                for kw in range(k):
                    windows.append(_shifted(chans[ci], kh * wp + kw, hpwp))

        if not last:
            nk, npad = layers[l + 1][2], layers[l + 1][3]
            pe_n = nk - 1 - npad
            wp_n = layers[l + 1][5] + 2 * pe_n
            # TODO(synk): only the pe_n-wide halo ring needs zeroing; this
            # branch is only reached for >= 3 conv layers (non-default).
            scratch[l][...] = jnp.zeros_like(scratch[l])

        taps = cin * k * k
        for co in range(cout):
            # 4 partial accumulators break the serial VALU dependence chain.
            parts = [None, None, None, None]
            for t in range(taps):
                prod = windows[t] * cw_ref[w_off + co * taps + t]
                slot = t & 3
                parts[slot] = prod if parts[slot] is None else parts[slot] + prod
            acc = parts[0]
            for p in parts[1:]:
                if p is not None:
                    acc = acc + p
            y = jnp.maximum(acc + cb_ref[b_off + co], 0.0)        # ReLU
            if last:
                # Lane-dense store; valid pixels live at r*Wp + c (r<Hout,
                # c<Wout) and are cropped in the JAX wrapper for free.
                o_ref[:, co * hpwp:(co + 1) * hpwp] = y
            else:
                # TODO(synk): per-row scatter only hit for >= 3 conv layers.
                for r in range(hout):
                    dst = (r + pe_n) * wp_n + pe_n
                    scratch[l][:, co, dst:dst + wout] = y[:, r * wp:r * wp + wout]
        w_off += cout * taps
        b_off += cout


# ---------------- One-off parameter packing (hoisted out of forward) ---------

def pack_decoder_params(params, feature_size=(28, 28)):
    """Host/XLA one-off prep: fold the first (linear) ConvTranspose2d into the
    FC weights/bias, bake the next layer's zero halo in as zero columns, flip
    + transpose the remaining ConvTranspose2d weights into cross-correlation
    order (flattened for SMEM), and record static geometry."""
    H, W = int(feature_size[0]), int(feature_size[1])
    assert H == W, "module assumes square feature maps (uses sqrt)"

    layers = []
    hin, win = H, W
    for layer in params["convs"]:
        cin, cout, K, K2 = layer["w"].shape
        assert K == K2, "square kernels only"
        stride, pad = int(layer["stride"]), int(layer["padding"])
        # TODO(synk): only stride-1 ConvTranspose2d implemented (module default)
        assert stride == 1, "only stride-1 ConvTranspose2d implemented"
        assert pad <= K - 1, "padding must be <= kernel_size - 1"
        hout = hin + K - 1 - 2 * pad
        wout = win + K - 1 - 2 * pad
        layers.append((int(cin), int(cout), int(K), pad, hin, win, hout, wout))
        hin, win = hout, wout

    latent = params["fc_w"].shape[0]
    c0, pad0 = layers[0][0], layers[0][3]
    assert params["fc_w"].shape[1] == c0 * H * W

    # ---- Fold conv layer 0 into the FC:
    #   conv0(x @ Wfc + bfc) == x @ conv0_nobias(Wfc) + conv0_withbias(bfc).
    w0 = params["convs"][0]["w"]
    b0 = params["convs"][0]["b"]
    fcw_img = _convt_pre(params["fc_w"].reshape(latent, c0, H, W),
                         w0, None, 1, pad0)
    fcb_img = _convt_pre(params["fc_b"].reshape(1, c0, H, W),
                         w0, b0, 1, pad0)

    rem = tuple(layers[1:])
    if rem:  # bake the next layer's zero halo in as zero columns
        pe1 = rem[0][2] - 1 - rem[0][3]
        fcw_img = jnp.pad(fcw_img, ((0, 0), (0, 0), (pe1, pe1), (pe1, pe1)))
        fcb_img = jnp.pad(fcb_img, ((0, 0), (0, 0), (pe1, pe1), (pe1, pe1)))
    fcw = fcw_img.reshape(latent, -1).astype(jnp.float32)
    fcb = fcb_img.reshape(1, -1).astype(jnp.float32)

    ws, bs = [], []
    for layer in params["convs"][1:]:
        w = layer["w"]                                         # (Cin,Cout,K,K)
        wc = jnp.transpose(w[:, :, ::-1, ::-1], (1, 0, 2, 3))  # flip + swap
        ws.append(wc.reshape(-1))
        bs.append(layer["b"])
    if ws:
        conv_w = jnp.concatenate(ws).astype(jnp.float32)
        conv_b = jnp.concatenate(bs).astype(jnp.float32)
    else:  # keep SMEM operands non-empty for single-conv configs
        conv_w = jnp.zeros((1,), jnp.float32)
        conv_b = jnp.zeros((1,), jnp.float32)

    packed = dict(fc_w=fcw, fc_b=fcb, conv_w=conv_w, conv_b=conv_b)
    meta = dict(rem_layers=rem,
                out_geom=(layers[-1][1], layers[-1][6], layers[-1][7]))
    return packed, meta


# ---------------- Forward wrapper (single pallas_call) -----------------------

def cnn_decoder_forward(x, packed, meta):
    B = x.shape[0]
    rem = meta["rem_layers"]
    cout_f, hout_f, wout_f = meta["out_geom"]

    if rem:
        _, _, k_l, pad_l, hin_l, win_l, _, _ = rem[-1]
        pe_l = k_l - 1 - pad_l
        hp_l, wp_l = hin_l + 2 * pe_l, win_l + 2 * pe_l
    else:
        hp_l, wp_l = hout_f, wout_f
    out_cols = cout_f * hp_l * wp_l

    scratch = []
    for (cin, cout, K, pad, hin, win, hout, wout) in rem[1:]:
        pe = K - 1 - pad
        scratch.append(
            pltpu.VMEM((B, cin, (hin + 2 * pe) * (win + 2 * pe)), jnp.float32))

    kern = functools.partial(_decoder_kernel, layers=rem)
    vmem = pl.BlockSpec(memory_space=pltpu.MemorySpace.VMEM)
    smem = pl.BlockSpec(memory_space=pltpu.MemorySpace.SMEM)
    # TODO(synk): for large batch add a grid over B marked "parallel" with
    # M-blocks of 256 (v6e/v7x MXU) / 128 (v5e) and re-derive the per-block
    # VMEM budget for v7x's 64 MiB; at B=2 per-step overhead would dominate.
    flat = pl.pallas_call(
        kern,
        out_shape=jax.ShapeDtypeStruct((B, out_cols), jnp.float32),
        in_specs=[vmem, vmem, vmem, smem, smem],
        out_specs=vmem,
        scratch_shapes=scratch,
        compiler_params=pltpu.CompilerParams(
            # Tiny footprint today; explicit limit stays inside v5e's 16 MiB
            # scoped default and leaves ample headroom on v7x's 64 MiB VMEM.
            vmem_limit_bytes=16 * 1024 * 1024),
    )(x, packed["fc_w"], packed["fc_b"], packed["conv_w"], packed["conv_b"])

    # Free layout plumbing: crop the valid interior out of the lane-dense slab
    # and restore NCHW.
    return flat.reshape(B, cout_f, hp_l, wp_l)[:, :, :hout_f, :wout_f]


# ---------------- Parameter setup (deterministic, PyTorch-shaped) ------------

def init_cnn_decoder(key, latent_dims, feature_size=(28, 28), channels=None,
                     kernel_sizes=None, strides=None, paddings=None):
    if channels is None:
        channels = [1, 1]
    if kernel_sizes is None:
        kernel_sizes = [5] * len(channels)
    if strides is None:
        strides = [1] * len(channels)
    if paddings is None:
        paddings = [2] * len(channels)
    n = len(channels)
    fc_out = int(feature_size[0] * feature_size[0] * channels[0])
    keys = jax.random.split(key, 2 + 2 * n)
    bound = 1.0 / float(latent_dims) ** 0.5
    params = {
        "fc_w": jax.random.uniform(keys[0], (latent_dims, fc_out),
                                   jnp.float32, -bound, bound),
        "fc_b": jax.random.uniform(keys[1], (fc_out,), jnp.float32,
                                   -bound, bound),
        "convs": [],
    }
    for l in range(n):
        cin = channels[l]
        cout = channels[l + 1] if l + 1 < n else 1
        K = kernel_sizes[l]
        cb = 1.0 / float(cout * K * K) ** 0.5
        w = jax.random.uniform(keys[2 + 2 * l], (cin, cout, K, K),
                               jnp.float32, -cb, cb)
        b = jax.random.uniform(keys[3 + 2 * l], (cout,), jnp.float32, -cb, cb)
        params["convs"].append(
            dict(w=w, b=b, stride=strides[l], padding=paddings[l]))
    return params, channels


# ---------------- Pure-JAX reference ------------------------------------------

def cnn_decoder_ref(x, params, channels):
    h = x @ params["fc_w"] + params["fc_b"]
    B = x.shape[0]
    in_ch = channels[0]
    side = isqrt(h.shape[-1] // in_ch)
    h = h.reshape(B, in_ch, side, side)
    for layer in params["convs"]:
        h = jnp.maximum(
            _convt_pre(h, layer["w"], layer["b"],
                       layer["stride"], layer["padding"]), 0.0)
    return h


if __name__ == "__main__":
    key = jax.random.PRNGKey(0)
    k_param, k_x = jax.random.split(key)
    latent_dims = 8
    batch = 2
    params, channels = init_cnn_decoder(k_param, latent_dims)
    x = jax.random.normal(k_x, (batch, latent_dims), jnp.float32)

    packed, meta = pack_decoder_params(params, feature_size=(28, 28))
    out = cnn_decoder_forward(x, packed, meta)
    out = jax.block_until_ready(out)

    ref = cnn_decoder_ref(x, params, channels)
    assert out.shape == (batch, 1, 28, 28), out.shape
    err = float(jnp.max(jnp.abs(out - ref)))
    assert jnp.allclose(out, ref, atol=5e-5, rtol=1e-5), err
    print("KERNEL_OK")
</pallas_src>

<mosaic_0001>
module attributes {stable_mosaic.version = 11 : i64} {
  func.func @_decoder_kernel(%arg0: memref<2x8xf32, #tpu.memory_space<vmem>>, %arg1: memref<8x1024xf32, #tpu.memory_space<vmem>>, %arg2: memref<1x1024xf32, #tpu.memory_space<vmem>>, %arg3: memref<25xf32, #tpu.memory_space<smem>>, %arg4: memref<1xf32, #tpu.memory_space<smem>>, %arg5: memref<2x1024xf32, #tpu.memory_space<vmem>>) attributes {dimension_semantics = [], scalar_prefetch = 0 : i64, scratch_operands = 0 : i64, tpu.core_type = #tpu.core_type<tc>} {
    %c0 = arith.constant 0 : index
    %c0_0 = arith.constant 0 : index
    %0 = vector.load %arg0[%c0, %c0_0] : memref<2x8xf32, #tpu.memory_space<vmem>>, vector<2x8xf32>
    %c0_1 = arith.constant 0 : index
    %c0_2 = arith.constant 0 : index
    %1 = vector.load %arg1[%c0_1, %c0_2] : memref<8x1024xf32, #tpu.memory_space<vmem>>, vector<8x1024xf32>
    %cst = arith.constant dense<0.000000e+00> : vector<2x1024xf32>
    %2 = tpu.matmul %0, %1, %cst {dimension_numbers = #tpu.dot_dimension_numbers<[1], [0], [0], [1], [0, 0, 1, 1], [], []>} : vector<2x8xf32>, vector<8x1024xf32>, vector<2x1024xf32> -> vector<2x1024xf32>
    %c0_3 = arith.constant 0 : index
    %c0_4 = arith.constant 0 : index
    %3 = vector.load %arg2[%c0_3, %c0_4] : memref<1x1024xf32, #tpu.memory_space<vmem>>, vector<1x1024xf32>
    %4 = vector.broadcast %3 : vector<1x1024xf32> to vector<2x1024xf32>
    %5 = arith.addf %2, %4 : vector<2x1024xf32>
    %cst_5 = arith.constant 0.000000e+00 : f32
    %6 = vector.broadcast %cst_5 : f32 to vector<2x1024xf32>
    %7 = arith.maximumf %5, %6 : vector<2x1024xf32>
    %c1023_i32 = arith.constant 1023 : i32
    %8 = tpu.dynamic_rotate %7 by %c1023_i32 dim 1 : vector<2x1024xf32>, i32 -> vector<2x1024xf32>
    %c1022_i32 = arith.constant 1022 : i32
    %9 = tpu.dynamic_rotate %7 by %c1022_i32 dim 1 : vector<2x1024xf32>, i32 -> vector<2x1024xf32>
    %c1021_i32 = arith.constant 1021 : i32
    %10 = tpu.dynamic_rotate %7 by %c1021_i32 dim 1 : vector<2x1024xf32>, i32 -> vector<2x1024xf32>
    %c1020_i32 = arith.constant 1020 : i32
    %11 = tpu.dynamic_rotate %7 by %c1020_i32 dim 1 : vector<2x1024xf32>, i32 -> vector<2x1024xf32>
    %c992_i32 = arith.constant 992 : i32
    %12 = tpu.dynamic_rotate %7 by %c992_i32 dim 1 : vector<2x1024xf32>, i32 -> vector<2x1024xf32>
    %c991_i32 = arith.constant 991 : i32
    %13 = tpu.dynamic_rotate %7 by %c991_i32 dim 1 : vector<2x1024xf32>, i32 -> vector<2x1024xf32>
    %c990_i32 = arith.constant 990 : i32
    %14 = tpu.dynamic_rotate %7 by %c990_i32 dim 1 : vector<2x1024xf32>, i32 -> vector<2x1024xf32>
    %c989_i32 = arith.constant 989 : i32
    %15 = tpu.dynamic_rotate %7 by %c989_i32 dim 1 : vector<2x1024xf32>, i32 -> vector<2x1024xf32>
    %c988_i32 = arith.constant 988 : i32
    %16 = tpu.dynamic_rotate %7 by %c988_i32 dim 1 : vector<2x1024xf32>, i32 -> vector<2x1024xf32>
    %c960_i32 = arith.constant 960 : i32
    %17 = tpu.dynamic_rotate %7 by %c960_i32 dim 1 : vector<2x1024xf32>, i32 -> vector<2x1024xf32>
    %c959_i32 = arith.constant 959 : i32
    %18 = tpu.dynamic_rotate %7 by %c959_i32 dim 1 : vector<2x1024xf32>, i32 -> vector<2x1024xf32>
    %c958_i32 = arith.constant 958 : i32
    %19 = tpu.dynamic_rotate %7 by %c958_i32 dim 1 : vector<2x1024xf32>, i32 -> vector<2x1024xf32>
    %c957_i32 = arith.constant 957 : i32
    %20 = tpu.dynamic_rotate %7 by %c957_i32 dim 1 : vector<2x1024xf32>, i32 -> vector<2x1024xf32>
    %c956_i32 = arith.constant 956 : i32
    %21 = tpu.dynamic_rotate %7 by %c956_i32 dim 1 : vector<2x1024xf32>, i32 -> vector<2x1024xf32>
    %c928_i32 = arith.constant 928 : i32
    %22 = tpu.dynamic_rotate %7 by %c928_i32 dim 1 : vector<2x1024xf32>, i32 -> vector<2x1024xf32>
    %c927_i32 = arith.constant 927 : i32
    %23 = tpu.dynamic_rotate %7 by %c927_i32 dim 1 : vector<2x1024xf32>, i32 -> vector<2x1024xf32>
    %c926_i32 = arith.constant 926 : i32
    %24 = tpu.dynamic_rotate %7 by %c926_i32 dim 1 : vector<2x1024xf32>, i32 -> vector<2x1024xf32>
    %c925_i32 = arith.constant 925 : i32
    %25 = tpu.dynamic_rotate %7 by %c925_i32 dim 1 : vector<2x1024xf32>, i32 -> vector<2x1024xf32>
    %c924_i32 = arith.constant 924 : i32
    %26 = tpu.dynamic_rotate %7 by %c924_i32 dim 1 : vector<2x1024xf32>, i32 -> vector<2x1024xf32>
    %c896_i32 = arith.constant 896 : i32
    %27 = tpu.dynamic_rotate %7 by %c896_i32 dim 1 : vector<2x1024xf32>, i32 -> vector<2x1024xf32>
    %c895_i32 = arith.constant 895 : i32
    %28 = tpu.dynamic_rotate %7 by %c895_i32 dim 1 : vector<2x1024xf32>, i32 -> vector<2x1024xf32>
    %c894_i32 = arith.constant 894 : i32
    %29 = tpu.dynamic_rotate %7 by %c894_i32 dim 1 : vector<2x1024xf32>, i32 -> vector<2x1024xf32>
    %c893_i32 = arith.constant 893 : i32
    %30 = tpu.dynamic_rotate %7 by %c893_i32 dim 1 : vector<2x1024xf32>, i32 -> vector<2x1024xf32>
    %c892_i32 = arith.constant 892 : i32
    %31 = tpu.dynamic_rotate %7 by %c892_i32 dim 1 : vector<2x1024xf32>, i32 -> vector<2x1024xf32>
    %c0_6 = arith.constant 0 : index
    %32 = memref.load %arg3[%c0_6] : memref<25xf32, #tpu.memory_space<smem>>
    %33 = vector.broadcast %32 : f32 to vector<2x1024xf32>
    %34 = arith.mulf %7, %33 : vector<2x1024xf32>
    %c1 = arith.constant 1 : index
    %35 = memref.load %arg3[%c1] : memref<25xf32, #tpu.memory_space<smem>>
    %36 = vector.broadcast %35 : f32 to vector<2x1024xf32>
    %37 = arith.mulf %8, %36 : vector<2x1024xf32>
    %c2 = arith.constant 2 : index
    %38 = memref.load %arg3[%c2] : memref<25xf32, #tpu.memory_space<smem>>
    %39 = vector.broadcast %38 : f32 to vector<2x1024xf32>
    %40 = arith.mulf %9, %39 : vector<2x1024xf32>
    %c3 = arith.constant 3 : index
    %41 = memref.load %arg3[%c3] : memref<25xf32, #tpu.memory_space<smem>>
    %42 = vector.broadcast %41 : f32 to vector<2x1024xf32>
    %43 = arith.mulf %10, %42 : vector<2x1024xf32>
    %c4 = arith.constant 4 : index
    %44 = memref.load %arg3[%c4] : memref<25xf32, #tpu.memory_space<smem>>
    %45 = vector.broadcast %44 : f32 to vector<2x1024xf32>
    %46 = arith.mulf %11, %45 : vector<2x1024xf32>
    %47 = arith.addf %34, %46 : vector<2x1024xf32>
    %c5 = arith.constant 5 : index
    %48 = memref.load %arg3[%c5] : memref<25xf32, #tpu.memory_space<smem>>
    %49 = vector.broadcast %48 : f32 to vector<2x1024xf32>
    %50 = arith.mulf %12, %49 : vector<2x1024xf32>
    %51 = arith.addf %37, %50 : vector<2x1024xf32>
    %c6 = arith.constant 6 : index
    %52 = memref.load %arg3[%c6] : memref<25xf32, #tpu.memory_space<smem>>
    %53 = vector.broadcast %52 : f32 to vector<2x1024xf32>
    %54 = arith.mulf %13, %53 : vector<2x1024xf32>
    %55 = arith.addf %40, %54 : vector<2x1024xf32>
    %c7 = arith.constant 7 : index
    %56 = memref.load %arg3[%c7] : memref<25xf32, #tpu.memory_space<smem>>
    %57 = vector.broadcast %56 : f32 to vector<2x1024xf32>
    %58 = arith.mulf %14, %57 : vector<2x1024xf32>
    %59 = arith.addf %43, %58 : vector<2x1024xf32>
    %c8 = arith.constant 8 : index
    %60 = memref.load %arg3[%c8] : memref<25xf32, #tpu.memory_space<smem>>
    %61 = vector.broadcast %60 : f32 to vector<2x1024xf32>
    %62 = arith.mulf %15, %61 : vector<2x1024xf32>
    %63 = arith.addf %47, %62 : vector<2x1024xf32>
    %c9 = arith.constant 9 : index
    %64 = memref.load %arg3[%c9] : memref<25xf32, #tpu.memory_space<smem>>
    %65 = vector.broadcast %64 : f32 to vector<2x1024xf32>
    %66 = arith.mulf %16, %65 : vector<2x1024xf32>
    %67 = arith.addf %51, %66 : vector<2x1024xf32>
    %c10 = arith.constant 10 : index
    %68 = memref.load %arg3[%c10] : memref<25xf32, #tpu.memory_space<smem>>
    %69 = vector.broadcast %68 : f32 to vector<2x1024xf32>
    %70 = arith.mulf %17, %69 : vector<2x1024xf32>
    %71 = arith.addf %55, %70 : vector<2x1024xf32>
    %c11 = arith.constant 11 : index
    %72 = memref.load %arg3[%c11] : memref<25xf32, #tpu.memory_space<smem>>
    %73 = vector.broadcast %72 : f32 to vector<2x1024xf32>
    %74 = arith.mulf %18, %73 : vector<2x1024xf32>
    %75 = arith.addf %59, %74 : vector<2x1024xf32>
    %c12 = arith.constant 12 : index
    %76 = memref.load %arg3[%c12] : memref<25xf32, #tpu.memory_space<smem>>
    %77 = vector.broadcast %76 : f32 to vector<2x1024xf32>
    %78 = arith.mulf %19, %77 : vector<2x1024xf32>
    %79 = arith.addf %63, %78 : vector<2x1024xf32>
    %c13 = arith.constant 13 : index
    %80 = memref.load %arg3[%c13] : memref<25xf32, #tpu.memory_space<smem>>
    %81 = vector.broadcast %80 : f32 to vector<2x1024xf32>
    %82 = arith.mulf %20, %81 : vector<2x1024xf32>
    %83 = arith.addf %67, %82 : vector<2x1024xf32>
    %c14 = arith.constant 14 : index
    %84 = memref.load %arg3[%c14] : memref<25xf32, #tpu.memory_space<smem>>
    %85 = vector.broadcast %84 : f32 to vector<2x1024xf32>
    %86 = arith.mulf %21, %85 : vector<2x1024xf32>
    %87 = arith.addf %71, %86 : vector<2x1024xf32>
    %c15 = arith.constant 15 : index
    %88 = memref.load %arg3[%c15] : memref<25xf32, #tpu.memory_space<smem>>
    %89 = vector.broadcast %88 : f32 to vector<2x1024xf32>
    %90 = arith.mulf %22, %89 : vector<2x1024xf32>
    %91 = arith.addf %75, %90 : vector<2x1024xf32>
    %c16 = arith.constant 16 : index
    %92 = memref.load %arg3[%c16] : memref<25xf32, #tpu.memory_space<smem>>
    %93 = vector.broadcast %92 : f32 to vector<2x1024xf32>
    %94 = arith.mulf %23, %93 : vector<2x1024xf32>
    %95 = arith.addf %79, %94 : vector<2x1024xf32>
    %c17 = arith.constant 17 : index
    %96 = memref.load %arg3[%c17] : memref<25xf32, #tpu.memory_space<smem>>
    %97 = vector.broadcast %96 : f32 to vector<2x1024xf32>
    %98 = arith.mulf %24, %97 : vector<2x1024xf32>
    %99 = arith.addf %83, %98 : vector<2x1024xf32>
    %c18 = arith.constant 18 : index
    %100 = memref.load %arg3[%c18] : memref<25xf32, #tpu.memory_space<smem>>
    %101 = vector.broadcast %100 : f32 to vector<2x1024xf32>
    %102 = arith.mulf %25, %101 : vector<2x1024xf32>
    %103 = arith.addf %87, %102 : vector<2x1024xf32>
    %c19 = arith.constant 19 : index
    %104 = memref.load %arg3[%c19] : memref<25xf32, #tpu.memory_space<smem>>
    %105 = vector.broadcast %104 : f32 to vector<2x1024xf32>
    %106 = arith.mulf %26, %105 : vector<2x1024xf32>
    %107 = arith.addf %91, %106 : vector<2x1024xf32>
    %c20 = arith.constant 20 : index
    %108 = memref.load %arg3[%c20] : memref<25xf32, #tpu.memory_space<smem>>
    %109 = vector.broadcast %108 : f32 to vector<2x1024xf32>
    %110 = arith.mulf %27, %109 : vector<2x1024xf32>
    %111 = arith.addf %95, %110 : vector<2x1024xf32>
    %c21 = arith.constant 21 : index
    %112 = memref.load %arg3[%c21] : memref<25xf32, #tpu.memory_space<smem>>
    %113 = vector.broadcast %112 : f32 to vector<2x1024xf32>
    %114 = arith.mulf %28, %113 : vector<2x1024xf32>
    %115 = arith.addf %99, %114 : vector<2x1024xf32>
    %c22 = arith.constant 22 : index
    %116 = memref.load %arg3[%c22] : memref<25xf32, #tpu.memory_space<smem>>
    %117 = vector.broadcast %116 : f32 to vector<2x1024xf32>
    %118 = arith.mulf %29, %117 : vector<2x1024xf32>
    %119 = arith.addf %103, %118 : vector<2x1024xf32>
    %c23 = arith.constant 23 : index
    %120 = memref.load %arg3[%c23] : memref<25xf32, #tpu.memory_space<smem>>
    %121 = vector.broadcast %120 : f32 to vector<2x1024xf32>
    %122 = arith.mulf %30, %121 : vector<2x1024xf32>
    %123 = arith.addf %107, %122 : vector<2x1024xf32>
    %c24 = arith.constant 24 : index
    %124 = memref.load %arg3[%c24] : memref<25xf32, #tpu.memory_space<smem>>
    %125 = vector.broadcast %124 : f32 to vector<2x1024xf32>
    %126 = arith.mulf %31, %125 : vector<2x1024xf32>
    %127 = arith.addf %111, %126 : vector<2x1024xf32>
    %128 = arith.addf %127, %115 : vector<2x1024xf32>
    %129 = arith.addf %128, %119 : vector<2x1024xf32>
    %130 = arith.addf %129, %123 : vector<2x1024xf32>
    %c0_7 = arith.constant 0 : index
    %131 = memref.load %arg4[%c0_7] : memref<1xf32, #tpu.memory_space<smem>>
    %132 = vector.broadcast %131 : f32 to vector<2x1024xf32>
    %133 = arith.addf %130, %132 : vector<2x1024xf32>
    %cst_8 = arith.constant 0.000000e+00 : f32
    %134 = vector.broadcast %cst_8 : f32 to vector<2x1024xf32>
    %135 = arith.maximumf %133, %134 : vector<2x1024xf32>
    %c0_9 = arith.constant 0 : index
    %c0_10 = arith.constant 0 : index
    %136 = vector.load %arg5[%c0_9, %c0_10] : memref<2x1024xf32, #tpu.memory_space<vmem>>, vector<2x1024xf32>
    tpu.vector_store %arg5[%c0_9, %c0_10], %135 {strides = array<i32>} : memref<2x1024xf32, #tpu.memory_space<vmem>>, vector<2x1024xf32>,
    return
  }
}

</mosaic_0001>

<llo_original>
// kernel: tpu_custom_call.1
$region0: #{tpu_custom_call.1}
  #allocation0 [shape = 'u32[]', space=smem, size = 0x4, offset = 0x4, fixed_abs, tag = 'smem constant byte address 0x4 - core index']
  #allocation1 [shape = 'u32[144,128]{1,0:T(1,128)}', space=vmem, size = 0x12000, scoped, tag = 'internal scratch']
  #allocation2 [shape = 'f32[1]{0:T(128)S(6)}', space=smem, size = 0x200, scoped, tag = 'scoped memory for tpu_custom_call.1']
  %s0 = inlined_call_operand.vmem [shape: f32[2,8], index: 0, kind: input, shape index: {}]
  %s1 = inlined_call_operand.hbm [shape: f32[8,1024], index: 1, kind: input, shape index: {}]
  %s2 = inlined_call_operand.vmem [shape: f32[1,1024], index: 2, kind: input, shape index: {}]
  %s3 = inlined_call_operand.vmem [shape: f32[25], index: 3, kind: input, shape index: {}]
  %s4 = inlined_call_operand.<no memory space> [shape: f32[1], index: 4, kind: input, shape index: {}]
  %s5 = inlined_call_operand.hbm [shape: f32[2,1024], index: 5, kind: output, shape index: {}]
  %s6 = sld [smem:[#allocation0]]
  $region38: #{tpu_custom_call.1} parent=0
    _
  %s8 = ssub.s32 1, %s6
  %s9 = scalar_select 0, %s8, %s6
  %10 = sst [smem:[#allocation2]] %s4
  $region1: #{tpu_custom_call.1} parent=0
    #allocation3 [shape = 'u8[32768]{0}', space=vmem, size = 0x8000, scoped, tag = 'input window, operand 1, single buffered']
    #allocation4 [shape = 's32[1]{0}', space=sflag, size = 0x4, scoped, tag = 'scoped memory for tpu_custom_call.1']
    #allocation5 [shape = 's32[1]{0}', space=sflag, size = 0x4, scoped, tag = 'scoped memory for tpu_custom_call.1']
    #allocation6 [shape = 's32[1]{0}', space=sflag, size = 0x4, scoped, tag = 'scoped memory for tpu_custom_call.1']
    #allocation7 [shape = 'u8[512]{0}', space=smem, size = 0x200, scoped, tag = 'input window, operand 3, single buffered']
    #allocation8 [shape = 'u8[8192]{0}', space=vmem, size = 0x2000, scoped, tag = 'output window, operand 0, single buffered']
    %11 = vsyncpa [#allocation4], 0
    %12 = vsyncpa [#allocation6], 0
    %13 = vsyncpa [#allocation5], 0
    // Predicated region
    $region2: #{tpu_custom_call.1} parent=1 // pred_check
      _
    $region3: #{tpu_custom_call.1} parent=1 // pred_check_branch
      %15 = sbr.rel (0) target = $region5
    $region4: #{tpu_custom_call.1} parent=1 // pred_region
      _
    $region5: #{tpu_custom_call.1} parent=1 // pred_fallthru
      _
    // Predicated region
    $region6: #{tpu_custom_call.1} parent=1 // pred_check
      _
    $region7: #{tpu_custom_call.1} parent=1 // pred_check_branch
      %17 = sbr.rel (0) target = $region9
    $region8: #{tpu_custom_call.1} parent=1 // pred_region
      %s19 = ssub.s32 1024, 1024
      %20 = vsyncadd [#allocation4], %s19
      %s22 = sshll.u32 [#allocation3], 4
      %s23 = int_to_ptr.vmem [resolvable:$true] %s22
      %25 = dma.hbm_to_vmem [thread:$0]  %s1, 1024, %s23, [#allocation4]
    $region9: #{tpu_custom_call.1} parent=1 // pred_fallthru
      _
    // Predicated region
    $region10: #{tpu_custom_call.1} parent=1 // pred_check
      _
    $region11: #{tpu_custom_call.1} parent=1 // pred_check_branch
      %27 = sbr.rel (0) target = $region13
    $region12: #{tpu_custom_call.1} parent=1 // pred_region
      _
    $region13: #{tpu_custom_call.1} parent=1 // pred_fallthru
      _
    // Predicated region
    $region14: #{tpu_custom_call.1} parent=1 // pred_check
      _
    $region15: #{tpu_custom_call.1} parent=1 // pred_check_branch
      %29 = sbr.rel (0) target = $region17
    $region16: #{tpu_custom_call.1} parent=1 // pred_region
      %s31 = ssub.s32 16, 16
      %32 = vsyncadd [#allocation6], %s31
      %s34 = sshll.u32 %s3, 4
      %s35 = int_to_ptr.vmem [resolvable:$true] %s34
      %37 = dma.vmem_to_smem %s35, 16, [#allocation7], [#allocation6]
    $region17: #{tpu_custom_call.1} parent=1 // pred_fallthru
      _
    // Predicated region
    $region18: #{tpu_custom_call.1} parent=1 // pred_check
      _
    $region19: #{tpu_custom_call.1} parent=1 // pred_check_branch
      %39 = sbr.rel (0) target = $region21
    $region20: #{tpu_custom_call.1} parent=1 // pred_region
      _
    $region21: #{tpu_custom_call.1} parent=1 // pred_fallthru
      _
    // Predicated region
    $region22: #{tpu_custom_call.1} parent=1 // pred_check
      _
    $region23: #{tpu_custom_call.1} parent=1 // pred_check_branch
      %41 = sbr.rel (0) target = $region25
    $region24: #{tpu_custom_call.1} parent=1 // pred_region
      %42 = dma.done [#allocation4], 1024
    $region25: #{tpu_custom_call.1} parent=1 // pred_fallthru
      _
    // Predicated region
    $region26: #{tpu_custom_call.1} parent=1 // pred_check
      _
    $region27: #{tpu_custom_call.1} parent=1 // pred_check_branch
      %44 = sbr.rel (0) target = $region29
    $region28: #{tpu_custom_call.1} parent=1 // pred_region
      %45 = dma.done [#allocation6], 16
    $region29: #{tpu_custom_call.1} parent=1 // pred_fallthru
      _
    %46 = sfence
    %v47 = vld [vmem:[%s0] sm:$0x3]
    %v48 = vld [vmem:[#allocation3] sm:$0xff]
    %v49 = vld [vmem:[#allocation3 + $0x8] sm:$0xff]
    %v50 = vld [vmem:[#allocation3 + $0x10] sm:$0xff]
    %v51 = vld [vmem:[#allocation3 + $0x18] sm:$0xff]
    %v52 = vld [vmem:[#allocation3 + $0x20] sm:$0xff]
    %v53 = vld [vmem:[#allocation3 + $0x28] sm:$0xff]
    %v54 = vld [vmem:[#allocation3 + $0x30] sm:$0xff]
    %v55 = vld [vmem:[#allocation3 + $0x38] sm:$0xff]
    %v56 = vld [vmem:[%s2] sm:$0xff]
    %v58 = vlaneseq
    %v59 = vshrl.u32 %v58, 7
    %v60 = vsub.s32 0, %v59
    %v61 = vrot.slane %v56, %v60
    %v62 = vlaneseq
    %v63 = vshrl.u32 %v62, 7
    %v64 = vsub.s32 1, %v63
    %v65 = vrot.slane %v56, %v64
    %v66 = vlaneseq
    %v67 = vshrl.u32 %v66, 7
    %v68 = vsub.s32 2, %v67
    %v69 = vrot.slane %v56, %v68
    %v70 = vlaneseq
    %v71 = vshrl.u32 %v70, 7
    %v72 = vsub.s32 3, %v71
    %v73 = vrot.slane %v56, %v72
    %v74 = vlaneseq
    %v75 = vshrl.u32 %v74, 7
    %v76 = vsub.s32 4, %v75
    %v77 = vrot.slane %v56, %v76
    %v78 = vlaneseq
    %v79 = vshrl.u32 %v78, 7
    %v80 = vsub.s32 5, %v79
    %v81 = vrot.slane %v56, %v80
    %v82 = vlaneseq
    %v83 = vshrl.u32 %v82, 7
    %v84 = vsub.s32 6, %v83
    %v85 = vrot.slane %v56, %v84
    %v86 = vlaneseq
    %v87 = vshrl.u32 %v86, 7
    %v88 = vsub.s32 7, %v87
    %v89 = vrot.slane %v56, %v88
    %vm98 = vcmask 64512
    %v100 = vsel %vm98, %v47, 0
    %102 = vmatprep.subr.mxu0 %v49
    %103 = vmatpush1.msra.mxu0 %v48
    %104 = vmatprep.subr.mxu0 0.0
    %105 = vmatpush1.msra.mxu0 0.0
    %106 = vmatprep.subr.mxu0 0.0
    %107 = vmatpush1.msra.mxu0 0.0
    %108 = vmatprep.subr.mxu0 0.0
    %109 = vmatpush1.msra.mxu0 0.0
    %110 = vmatprep.subr.mxu0 0.0
    %111 = vmatpush1.msra.mxu0 0.0
    %112 = vmatprep.subr.mxu0 0.0
    %113 = vmatpush1.msra.mxu0 0.0
    %114 = vmatprep.subr.mxu0 0.0
    %115 = vmatpush1.msra.mxu0 0.0
    %116 = vmatprep.subr.mxu0 0.0
    %117 = vmatpush1.msra.mxu0 0.0
    %118 = vmatprep.subr.mxu0 0.0
    %119 = vmatpush1.msra.mxu0 0.0
    %120 = vmatprep.subr.mxu0 0.0
    %121 = vmatpush1.msra.mxu0 0.0
    %122 = vmatprep.subr.mxu0 0.0
    %123 = vmatpush1.msra.mxu0 0.0
    %124 = vmatprep.subr.mxu0 0.0
    %125 = vmatpush1.msra.mxu0 0.0
    %126 = vmatprep.subr.mxu0 0.0
    %127 = vmatpush1.msra.mxu0 0.0
    %128 = vmatprep.subr.mxu0 0.0
    %129 = vmatpush1.msra.mxu0 0.0
    %130 = vmatprep.subr.mxu0 0.0
    %131 = vmatpush1.msra.mxu0 0.0
    %132 = vmatprep.subr.mxu0 0.0
    %133 = vmatpush1.msra.mxu0 0.0
    %134 = vmatprep.subr.mxu0 0.0
    %135 = vmatpush1.msra.mxu0 0.0
    %136 = vmatprep.subr.mxu0 0.0
    %137 = vmatpush1.msra.mxu0 0.0
    %138 = vmatprep.subr.mxu0 0.0
    %139 = vmatpush1.msra.mxu0 0.0
    %140 = vmatprep.subr.mxu0 0.0
    %141 = vmatpush1.msra.mxu0 0.0
    %142 = vmatprep.subr.mxu0 0.0
    %143 = vmatpush1.msra.mxu0 0.0
    %144 = vmatprep.subr.mxu0 0.0
    %145 = vmatpush1.msra.mxu0 0.0
    %146 = vmatprep.subr.mxu0 0.0
    %147 = vmatpush1.msra.mxu0 0.0
    %148 = vmatprep.subr.mxu0 0.0
    %149 = vmatpush1.msra.mxu0 0.0
    %150 = vmatprep.subr.mxu0 0.0
    %151 = vmatpush1.msra.mxu0 0.0
    %152 = vmatprep.subr.mxu0 0.0
    %153 = vmatpush1.msra.mxu0 0.0
    %154 = vmatprep.subr.mxu0 0.0
    %155 = vmatpush1.msra.mxu0 0.0
    %156 = vmatprep.subr.mxu0 0.0
    %157 = vmatpush1.msra.mxu0 0.0
    %158 = vmatprep.subr.mxu0 0.0
    %159 = vmatpush1.msra.mxu0 0.0
    %160 = vmatprep.subr.mxu0 0.0
    %161 = vmatpush1.msra.mxu0 0.0
    %162 = vmatprep.subr.mxu0 0.0
    %163 = vmatpush1.msra.mxu0 0.0
    %164 = vmatprep.subr.mxu0 0.0
    %165 = vmatpush1.msra.mxu0 0.0
    %166 = vmatprep.mubr.f32.mxu0 0.0
    %167 = vmatmul.mubr.f32.gmra.mrb[0].mxu0 %v100
    %v168 = vpop.f32.mrb[0].mxu0
    %v169 = vadd.f32 %v61, %v168
    %v170 = vpop.f32.mrb[0].mxu0
    %v171 = vadd.f32 %v65, %v170
    %172 = vdwg.mxu0
    %173 = vmatprep.subr.mxu0 %v51
    %174 = vmatpush1.msra.mxu0 %v50
    %175 = vmatprep.subr.mxu0 0.0
    %176 = vmatpush1.msra.mxu0 0.0
    %177 = vmatprep.subr.mxu0 0.0
    %178 = vmatpush1.msra.mxu0 0.0
    %179 = vmatprep.subr.mxu0 0.0
    %180 = vmatpush1.msra.mxu0 0.0
    %181 = vmatprep.subr.mxu0 0.0
    %182 = vmatpush1.msra.mxu0 0.0
    %183 = vmatprep.subr.mxu0 0.0
    %184 = vmatpush1.msra.mxu0 0.0
    %185 = vmatprep.subr.mxu0 0.0
    %186 = vmatpush1.msra.mxu0 0.0
    %187 = vmatprep.subr.mxu0 0.0
    %188 = vmatpush1.msra.mxu0 0.0
    %189 = vmatprep.subr.mxu0 0.0
    %190 = vmatpush1.msra.mxu0 0.0
    %191 = vmatprep.subr.mxu0 0.0
    %192 = vmatpush1.msra.mxu0 0.0
    %193 = vmatprep.subr.mxu0 0.0
    %194 = vmatpush1.msra.mxu0 0.0
    %195 = vmatprep.subr.mxu0 0.0
    %196 = vmatpush1.msra.mxu0 0.0
    %197 = vmatprep.subr.mxu0 0.0
    %198 = vmatpush1.msra.mxu0 0.0
    %199 = vmatprep.subr.mxu0 0.0
    %200 = vmatpush1.msra.mxu0 0.0
    %201 = vmatprep.subr.mxu0 0.0
    %202 = vmatpush1.msra.mxu0 0.0
    %203 = vmatprep.subr.mxu0 0.0
    %204 = vmatpush1.msra.mxu0 0.0
    %205 = vmatprep.subr.mxu0 0.0
    %206 = vmatpush1.msra.mxu0 0.0
    %207 = vmatprep.subr.mxu0 0.0
    %208 = vmatpush1.msra.mxu0 0.0
    %209 = vmatprep.subr.mxu0 0.0
    %210 = vmatpush1.msra.mxu0 0.0
    %211 = vmatprep.subr.mxu0 0.0
    %212 = vmatpush1.msra.mxu0 0.0
    %213 = vmatprep.subr.mxu0 0.0
    %214 = vmatpush1.msra.mxu0 0.0
    %215 = vmatprep.subr.mxu0 0.0
    %216 = vmatpush1.msra.mxu0 0.0
    %217 = vmatprep.subr.mxu0 0.0
    %218 = vmatpush1.msra.mxu0 0.0
    %219 = vmatprep.subr.mxu0 0.0
    %220 = vmatpush1.msra.mxu0 0.0
    %221 = vmatprep.subr.mxu0 0.0
    %222 = vmatpush1.msra.mxu0 0.0
    %223 = vmatprep.subr.mxu0 0.0
    %224 = vmatpush1.msra.mxu0 0.0
    %225 = vmatprep.subr.mxu0 0.0
    %226 = vmatpush1.msra.mxu0 0.0
    %227 = vmatprep.subr.mxu0 0.0
    %228 = vmatpush1.msra.mxu0 0.0
    %229 = vmatprep.subr.mxu0 0.0
    %230 = vmatpush1.msra.mxu0 0.0
    %231 = vmatprep.subr.mxu0 0.0
    %232 = vmatpush1.msra.mxu0 0.0
    %233 = vmatprep.subr.mxu0 0.0
    %234 = vmatpush1.msra.mxu0 0.0
    %235 = vmatprep.subr.mxu0 0.0
    %236 = vmatpush1.msra.mxu0 0.0
    %237 = vmatprep.mubr.f32.mxu0 0.0
    %238 = vmatmul.mubr.f32.gmra.mrb[0].mxu0 %v100
    %v239 = vpop.f32.mrb[0].mxu0
    %v240 = vadd.f32 %v69, %v239
    %v241 = vpop.f32.mrb[0].mxu0
    %v242 = vadd.f32 %v73, %v241
    %243 = vdwg.mxu0
    %244 = vmatprep.subr.mxu0 %v53
    %245 = vmatpush1.msra.mxu0 %v52
    %246 = vmatprep.subr.mxu0 0.0
    %247 = vmatpush1.msra.mxu0 0.0
    %248 = vmatprep.subr.mxu0 0.0
    %249 = vmatpush1.msra.mxu0 0.0
    %250 = vmatprep.subr.mxu0 0.0
    %251 = vmatpush1.msra.mxu0 0.0
    %252 = vmatprep.subr.mxu0 0.0
    %253 = vmatpush1.msra.mxu0 0.0
    %254 = vmatprep.subr.mxu0 0.0
    %255 = vmatpush1.msra.mxu0 0.0
    %256 = vmatprep.subr.mxu0 0.0
    %257 = vmatpush1.msra.mxu0 0.0
    %258 = vmatprep.subr.mxu0 0.0
    %259 = vmatpush1.msra.mxu0 0.0
    %260 = vmatprep.subr.mxu0 0.0
    %261 = vmatpush1.msra.mxu0 0.0
    %262 = vmatprep.subr.mxu0 0.0
    %263 = vmatpush1.msra.mxu0 0.0
    %264 = vmatprep.subr.mxu0 0.0
    %265 = vmatpush1.msra.mxu0 0.0
    %266 = vmatprep.subr.mxu0 0.0
    %267 = vmatpush1.msra.mxu0 0.0
    %268 = vmatprep.subr.mxu0 0.0
    %269 = vmatpush1.msra.mxu0 0.0
    %270 = vmatprep.subr.mxu0 0.0
    %271 = vmatpush1.msra.mxu0 0.0
    %272 = vmatprep.subr.mxu0 0.0
    %273 = vmatpush1.msra.mxu0 0.0
    %274 = vmatprep.subr.mxu0 0.0
    %275 = vmatpush1.msra.mxu0 0.0
    %276 = vmatprep.subr.mxu0 0.0
    %277 = vmatpush1.msra.mxu0 0.0
    %278 = vmatprep.subr.mxu0 0.0
    %279 = vmatpush1.msra.mxu0 0.0
    %280 = vmatprep.subr.mxu0 0.0
    %281 = vmatpush1.msra.mxu0 0.0
    %282 = vmatprep.subr.mxu0 0.0
    %283 = vmatpush1.msra.mxu0 0.0
    %284 = vmatprep.subr.mxu0 0.0
    %285 = vmatpush1.msra.mxu0 0.0
    %286 = vmatprep.subr.mxu0 0.0
    %287 = vmatpush1.msra.mxu0 0.0
    %288 = vmatprep.subr.mxu0 0.0
    %289 = vmatpush1.msra.mxu0 0.0
    %290 = vmatprep.subr.mxu0 0.0
    %291 = vmatpush1.msra.mxu0 0.0
    %292 = vmatprep.subr.mxu0 0.0
    %293 = vmatpush1.msra.mxu0 0.0
    %294 = vmatprep.subr.mxu0 0.0
    %295 = vmatpush1.msra.mxu0 0.0
    %296 = vmatprep.subr.mxu0 0.0
    %297 = vmatpush1.msra.mxu0 0.0
    %298 = vmatprep.subr.mxu0 0.0
    %299 = vmatpush1.msra.mxu0 0.0
    %300 = vmatprep.subr.mxu0 0.0
    %301 = vmatpush1.msra.mxu0 0.0
    %302 = vmatprep.subr.mxu0 0.0
    %303 = vmatpush1.msra.mxu0 0.0
    %304 = vmatprep.subr.mxu0 0.0
    %305 = vmatpush1.msra.mxu0 0.0
    %306 = vmatprep.subr.mxu0 0.0
    %307 = vmatpush1.msra.mxu0 0.0
    %308 = vmatprep.mubr.f32.mxu0 0.0
    %309 = vmatmul.mubr.f32.gmra.mrb[0].mxu0 %v100
    %v310 = vpop.f32.mrb[0].mxu0
    %v311 = vadd.f32 %v77, %v310
    %v312 = vpop.f32.mrb[0].mxu0
    %v313 = vadd.f32 %v81, %v312
    %314 = vdwg.mxu0
    %315 = vmatprep.subr.mxu0 %v55
    %316 = vmatpush1.msra.mxu0 %v54
    %317 = vmatprep.subr.mxu0 0.0
    %318 = vmatpush1.msra.mxu0 0.0
    %319 = vmatprep.subr.mxu0 0.0
    %320 = vmatpush1.msra.mxu0 0.0
    %321 = vmatprep.subr.mxu0 0.0
    %322 = vmatpush1.msra.mxu0 0.0
    %323 = vmatprep.subr.mxu0 0.0
    %324 = vmatpush1.msra.mxu0 0.0
    %325 = vmatprep.subr.mxu0 0.0
    %326 = vmatpush1.msra.mxu0 0.0
    %327 = vmatprep.subr.mxu0 0.0
    %328 = vmatpush1.msra.mxu0 0.0
    %329 = vmatprep.subr.mxu0 0.0
    %330 = vmatpush1.msra.mxu0 0.0
    %331 = vmatprep.subr.mxu0 0.0
    %332 = vmatpush1.msra.mxu0 0.0
    %333 = vmatprep.subr.mxu0 0.0
    %334 = vmatpush1.msra.mxu0 0.0
    %335 = vmatprep.subr.mxu0 0.0
    %336 = vmatpush1.msra.mxu0 0.0
    %337 = vmatprep.subr.mxu0 0.0
    %338 = vmatpush1.msra.mxu0 0.0
    %339 = vmatprep.subr.mxu0 0.0
    %340 = vmatpush1.msra.mxu0 0.0
    %341 = vmatprep.subr.mxu0 0.0
    %342 = vmatpush1.msra.mxu0 0.0
    %343 = vmatprep.subr.mxu0 0.0
    %344 = vmatpush1.msra.mxu0 0.0
    %345 = vmatprep.subr.mxu0 0.0
    %346 = vmatpush1.msra.mxu0 0.0
    %347 = vmatprep.subr.mxu0 0.0
    %348 = vmatpush1.msra.mxu0 0.0
    %349 = vmatprep.subr.mxu0 0.0
    %350 = vmatpush1.msra.mxu0 0.0
    %351 = vmatprep.subr.mxu0 0.0
    %352 = vmatpush1.msra.mxu0 0.0
    %353 = vmatprep.subr.mxu0 0.0
    %354 = vmatpush1.msra.mxu0 0.0
    %355 = vmatprep.subr.mxu0 0.0
    %356 = vmatpush1.msra.mxu0 0.0
    %357 = vmatprep.subr.mxu0 0.0
    %358 = vmatpush1.msra.mxu0 0.0
    %359 = vmatprep.subr.mxu0 0.0
    %360 = vmatpush1.msra.mxu0 0.0
    %361 = vmatprep.subr.mxu0 0.0
    %362 = vmatpush1.msra.mxu0 0.0
    %363 = vmatprep.subr.mxu0 0.0
    %364 = vmatpush1.msra.mxu0 0.0
    %365 = vmatprep.subr.mxu0 0.0
    %366 = vmatpush1.msra.mxu0 0.0
    %367 = vmatprep.subr.mxu0 0.0
    %368 = vmatpush1.msra.mxu0 0.0
    %369 = vmatprep.subr.mxu0 0.0
    %370 = vmatpush1.msra.mxu0 0.0
    %371 = vmatprep.subr.mxu0 0.0
    %372 = vmatpush1.msra.mxu0 0.0
    %373 = vmatprep.subr.mxu0 0.0
    %374 = vmatpush1.msra.mxu0 0.0
    %375 = vmatprep.subr.mxu0 0.0
    %376 = vmatpush1.msra.mxu0 0.0
    %377 = vmatprep.subr.mxu0 0.0
    %378 = vmatpush1.msra.mxu0 0.0
    %379 = vmatprep.mubr.f32.mxu0 0.0
    %380 = vmatmul.mubr.f32.gmra.mrb[0].mxu0 %v100
    %v381 = vpop.f32.mrb[0].mxu0
    %v382 = vadd.f32 %v85, %v381
    %v383 = vpop.f32.mrb[0].mxu0
    %v384 = vadd.f32 %v89, %v383
    %385 = vdwg.mxu0
    %v386 = vmax.f32 %v169, 0.0
    %v387 = vmax.f32 %v171, 0.0
    %v388 = vmax.f32 %v240, 0.0
    %v389 = vmax.f32 %v242, 0.0
    %v390 = vmax.f32 %v311, 0.0
    %v391 = vmax.f32 %v313, 0.0
    %v392 = vmax.f32 %v382, 0.0
    %v393 = vmax.f32 %v384, 0.0
    %394 = vrot.lane.b32.xlu0 %v386, 127
    %v395 = vpop.permute.xlu0 %394
    %396 = vrot.lane.b32.xlu0 %v387, 127
    %v397 = vpop.permute.xlu0 %396
    %398 = vrot.lane.b32.xlu0 %v388, 127
    %v399 = vpop.permute.xlu0 %398
    %400 = vrot.lane.b32.xlu0 %v389, 127
    %v401 = vpop.permute.xlu0 %400
    %402 = vrot.lane.b32.xlu0 %v390, 127
    %v403 = vpop.permute.xlu0 %402
    %404 = vrot.lane.b32.xlu0 %v391, 127
    %v405 = vpop.permute.xlu0 %404
    %406 = vrot.lane.b32.xlu0 %v392, 127
    %v407 = vpop.permute.xlu0 %406
    %408 = vrot.lane.b32.xlu0 %v393, 127
    %v409 = vpop.permute.xlu0 %408
    %v410 = vlaneseq
    %v411 = vand.u32 %v410, 127
    %vm412 = vcmp.lt.s32.totalorder %v411, 127
    %v413 = vsel %vm412, %v407, %v409
    %v414 = vsel %vm412, %v405, %v407
    %v415 = vsel %vm412, %v403, %v405
    %v416 = vsel %vm412, %v401, %v403
    %v417 = vsel %vm412, %v399, %v401
    %v418 = vsel %vm412, %v397, %v399
    %v419 = vsel %vm412, %v395, %v397
    %v420 = vsel %vm412, %v409, %v395
    %421 = vrot.lane.b32.xlu0 %v386, 126
    %v422 = vpop.permute.xlu0 %421
    %423 = vrot.lane.b32.xlu0 %v387, 126
    %v424 = vpop.permute.xlu0 %423
    %425 = vrot.lane.b32.xlu0 %v388, 126
    %v426 = vpop.permute.xlu0 %425
    %427 = vrot.lane.b32.xlu0 %v389, 126
    %v428 = vpop.permute.xlu0 %427
    %429 = vrot.lane.b32.xlu0 %v390, 126
    %v430 = vpop.permute.xlu0 %429
    %431 = vrot.lane.b32.xlu0 %v391, 126
    %v432 = vpop.permute.xlu0 %431
    %433 = vrot.lane.b32.xlu0 %v392, 126
    %v434 = vpop.permute.xlu0 %433
    %435 = vrot.lane.b32.xlu0 %v393, 126
    %v436 = vpop.permute.xlu0 %435
    %vm437 = vcmp.lt.s32.totalorder %v411, 126
    %v438 = vsel %vm437, %v434, %v436
    %v439 = vsel %vm437, %v432, %v434
    %v440 = vsel %vm437, %v430, %v432
    %v441 = vsel %vm437, %v428, %v430
    %v442 = vsel %vm437, %v426, %v428
    %v443 = vsel %vm437, %v424, %v426
    %v444 = vsel %vm437, %v422, %v424
    %v445 = vsel %vm437, %v436, %v422
    %446 = vrot.lane.b32.xlu0 %v386, 125
    %v447 = vpop.permute.xlu0 %446
    %448 = vrot.lane.b32.xlu0 %v387, 125
    %v449 = vpop.permute.xlu0 %448
    %450 = vrot.lane.b32.xlu0 %v388, 125
    %v451 = vpop.permute.xlu0 %450
    %452 = vrot.lane.b32.xlu0 %v389, 125
    %v453 = vpop.permute.xlu0 %452
    %454 = vrot.lane.b32.xlu0 %v390, 125
    %v455 = vpop.permute.xlu0 %454
    %456 = vrot.lane.b32.xlu0 %v391, 125
    %v457 = vpop.permute.xlu0 %456
    %458 = vrot.lane.b32.xlu0 %v392, 125
    %v459 = vpop.permute.xlu0 %458
    %460 = vrot.lane.b32.xlu0 %v393, 125
    %v461 = vpop.permute.xlu0 %460
    %vm462 = vcmp.lt.s32.totalorder %v411, 125
    %v463 = vsel %vm462, %v459, %v461
    %v464 = vsel %vm462, %v457, %v459
    %v465 = vsel %vm462, %v455, %v457
    %v466 = vsel %vm462, %v453, %v455
    %v467 = vsel %vm462, %v451, %v453
    %v468 = vsel %vm462, %v449, %v451
    %v469 = vsel %vm462, %v447, %v449
    %v470 = vsel %vm462, %v461, %v447
    %471 = vrot.lane.b32.xlu0 %v386, 124
    %v472 = vpop.permute.xlu0 %471
    %473 = vrot.lane.b32.xlu0 %v387, 124
    %v474 = vpop.permute.xlu0 %473
    %475 = vrot.lane.b32.xlu0 %v388, 124
    %v476 = vpop.permute.xlu0 %475
    %477 = vrot.lane.b32.xlu0 %v389, 124
    %v478 = vpop.permute.xlu0 %477
    %479 = vrot.lane.b32.xlu0 %v390, 124
    %v480 = vpop.permute.xlu0 %479
    %481 = vrot.lane.b32.xlu0 %v391, 124
    %v482 = vpop.permute.xlu0 %481
    %483 = vrot.lane.b32.xlu0 %v392, 124
    %v484 = vpop.permute.xlu0 %483
    %485 = vrot.lane.b32.xlu0 %v393, 124
    %v486 = vpop.permute.xlu0 %485
    %vm487 = vcmp.lt.s32.totalorder %v411, 124
    %v488 = vsel %vm487, %v484, %v486
    %v489 = vsel %vm487, %v482, %v484
    %v490 = vsel %vm487, %v480, %v482
    %v491 = vsel %vm487, %v478, %v480
    %v492 = vsel %vm487, %v476, %v478
    %v493 = vsel %vm487, %v474, %v476
    %v494 = vsel %vm487, %v472, %v474
    %v495 = vsel %vm487, %v486, %v472
    %496 = vrot.lane.b32.xlu0 %v386, 96
    %v497 = vpop.permute.xlu0 %496
    %498 = vrot.lane.b32.xlu0 %v387, 96
    %v499 = vpop.permute.xlu0 %498
    %500 = vrot.lane.b32.xlu0 %v388, 96
    %v501 = vpop.permute.xlu0 %500
    %502 = vrot.lane.b32.xlu0 %v389, 96
    %v503 = vpop.permute.xlu0 %502
    %504 = vrot.lane.b32.xlu0 %v390, 96
    %v505 = vpop.permute.xlu0 %504
    %506 = vrot.lane.b32.xlu0 %v391, 96
    %v507 = vpop.permute.xlu0 %506
    %508 = vrot.lane.b32.xlu0 %v392, 96
    %v509 = vpop.permute.xlu0 %508
    %510 = vrot.lane.b32.xlu0 %v393, 96
    %v511 = vpop.permute.xlu0 %510
    %vm512 = vcmp.lt.s32.totalorder %v411, 96
    %v513 = vsel %vm512, %v509, %v511
    %v514 = vsel %vm512, %v507, %v509
    %v515 = vsel %vm512, %v505, %v507
    %v516 = vsel %vm512, %v503, %v505
    %v517 = vsel %vm512, %v501, %v503
    %v518 = vsel %vm512, %v499, %v501
    %v519 = vsel %vm512, %v497, %v499
    %v520 = vsel %vm512, %v511, %v497
    %521 = vrot.lane.b32.xlu0 %v386, 95
    %v522 = vpop.permute.xlu0 %521
    %523 = vrot.lane.b32.xlu0 %v387, 95
    %v524 = vpop.permute.xlu0 %523
    %525 = vrot.lane.b32.xlu0 %v388, 95
    %v526 = vpop.permute.xlu0 %525
    %527 = vrot.lane.b32.xlu0 %v389, 95
    %v528 = vpop.permute.xlu0 %527
    %529 = vrot.lane.b32.xlu0 %v390, 95
    %v530 = vpop.permute.xlu0 %529
    %531 = vrot.lane.b32.xlu0 %v391, 95
    %v532 = vpop.permute.xlu0 %531
    %533 = vrot.lane.b32.xlu0 %v392, 95
    %v534 = vpop.permute.xlu0 %533
    %535 = vrot.lane.b32.xlu0 %v393, 95
    %v536 = vpop.permute.xlu0 %535
    %vm537 = vcmp.lt.s32.totalorder %v411, 95
    %v538 = vsel %vm537, %v534, %v536
    %v539 = vsel %vm537, %v532, %v534
    %v540 = vsel %vm537, %v530, %v532
    %v541 = vsel %vm537, %v528, %v530
    %v542 = vsel %vm537, %v526, %v528
    %v543 = vsel %vm537, %v524, %v526
    %v544 = vsel %vm537, %v522, %v524
    %v545 = vsel %vm537, %v536, %v522
    %546 = vrot.lane.b32.xlu0 %v386, 94
    %v547 = vpop.permute.xlu0 %546
    %548 = vrot.lane.b32.xlu0 %v387, 94
    %v549 = vpop.permute.xlu0 %548
    %550 = vrot.lane.b32.xlu0 %v388, 94
    %v551 = vpop.permute.xlu0 %550
    %552 = vrot.lane.b32.xlu0 %v389, 94
    %v553 = vpop.permute.xlu0 %552
    %554 = vrot.lane.b32.xlu0 %v390, 94
    %v555 = vpop.permute.xlu0 %554
    %556 = vrot.lane.b32.xlu0 %v391, 94
    %v557 = vpop.permute.xlu0 %556
    %558 = vrot.lane.b32.xlu0 %v392, 94
    %v559 = vpop.permute.xlu0 %558
    %560 = vrot.lane.b32.xlu0 %v393, 94
    %v561 = vpop.permute.xlu0 %560
    %vm562 = vcmp.lt.s32.totalorder %v411, 94
    %v563 = vsel %vm562, %v559, %v561
    %v564 = vsel %vm562, %v557, %v559
    %v565 = vsel %vm562, %v555, %v557
    %v566 = vsel %vm562, %v553, %v555
    %v567 = vsel %vm562, %v551, %v553
    %v568 = vsel %vm562, %v549, %v551
    %v569 = vsel %vm562, %v547, %v549
    %v570 = vsel %vm562, %v561, %v547
    %571 = vrot.lane.b32.xlu0 %v386, 93
    %v572 = vpop.permute.xlu0 %571
    %573 = vrot.lane.b32.xlu0 %v387, 93
    %v574 = vpop.permute.xlu0 %573
    %575 = vrot.lane.b32.xlu0 %v388, 93
    %v576 = vpop.permute.xlu0 %575
    %577 = vrot.lane.b32.xlu0 %v389, 93
    %v578 = vpop.permute.xlu0 %577
    %579 = vrot.lane.b32.xlu0 %v390, 93
    %v580 = vpop.permute.xlu0 %579
    %581 = vrot.lane.b32.xlu0 %v391, 93
    %v582 = vpop.permute.xlu0 %581
    %583 = vrot.lane.b32.xlu0 %v392, 93
    %v584 = vpop.permute.xlu0 %583
    %585 = vrot.lane.b32.xlu0 %v393, 93
    %v586 = vpop.permute.xlu0 %585
    %vm587 = vcmp.lt.s32.totalorder %v411, 93
    %v588 = vsel %vm587, %v584, %v586
    %v589 = vsel %vm587, %v582, %v584
    %v590 = vsel %vm587, %v580, %v582
    %v591 = vsel %vm587, %v578, %v580
    %v592 = vsel %vm587, %v576, %v578
    %v593 = vsel %vm587, %v574, %v576
    %v594 = vsel %vm587, %v572, %v574
    %v595 = vsel %vm587, %v586, %v572
    %596 = vrot.lane.b32.xlu0 %v386, 92
    %v597 = vpop.permute.xlu0 %596
    %598 = vrot.lane.b32.xlu0 %v387, 92
    %v599 = vpop.permute.xlu0 %598
    %600 = vrot.lane.b32.xlu0 %v388, 92
    %v601 = vpop.permute.xlu0 %600
    %602 = vrot.lane.b32.xlu0 %v389, 92
    %v603 = vpop.permute.xlu0 %602
    %604 = vrot.lane.b32.xlu0 %v390, 92
    %v605 = vpop.permute.xlu0 %604
    %606 = vrot.lane.b32.xlu0 %v391, 92
    %v607 = vpop.permute.xlu0 %606
    %608 = vrot.lane.b32.xlu0 %v392, 92
    %v609 = vpop.permute.xlu0 %608
    %610 = vrot.lane.b32.xlu0 %v393, 92
    %v611 = vpop.permute.xlu0 %610
    %vm612 = vcmp.lt.s32.totalorder %v411, 92
    %v613 = vsel %vm612, %v609, %v611
    %v614 = vsel %vm612, %v607, %v609
    %v615 = vsel %vm612, %v605, %v607
    %v616 = vsel %vm612, %v603, %v605
    %v617 = vsel %vm612, %v601, %v603
    %v618 = vsel %vm612, %v599, %v601
    %v619 = vsel %vm612, %v597, %v599
    %v620 = vsel %vm612, %v611, %v597
    %621 = vrot.lane.b32.xlu0 %v386, 64
    %v622 = vpop.permute.xlu0 %621
    %623 = vrot.lane.b32.xlu0 %v387, 64
    %v624 = vpop.permute.xlu0 %623
    %625 = vrot.lane.b32.xlu0 %v388, 64
    %v626 = vpop.permute.xlu0 %625
    %627 = vrot.lane.b32.xlu0 %v389, 64
    %v628 = vpop.permute.xlu0 %627
    %629 = vrot.lane.b32.xlu0 %v390, 64
    %v630 = vpop.permute.xlu0 %629
    %631 = vrot.lane.b32.xlu0 %v391, 64
    %v632 = vpop.permute.xlu0 %631
    %633 = vrot.lane.b32.xlu0 %v392, 64
    %v634 = vpop.permute.xlu0 %633
    %635 = vrot.lane.b32.xlu0 %v393, 64
    %v636 = vpop.permute.xlu0 %635
    %vm637 = vcmp.lt.s32.totalorder %v411, 64
    %v638 = vsel %vm637, %v634, %v636
    %v639 = vsel %vm637, %v632, %v634
    %v640 = vsel %vm637, %v630, %v632
    %v641 = vsel %vm637, %v628, %v630
    %v642 = vsel %vm637, %v626, %v628
    %v643 = vsel %vm637, %v624, %v626
    %v644 = vsel %vm637, %v622, %v624
    %v645 = vsel %vm637, %v636, %v622
    %646 = vrot.lane.b32.xlu0 %v386, 63
    %v647 = vpop.permute.xlu0 %646
    %648 = vrot.lane.b32.xlu0 %v387, 63
    %v649 = vpop.permute.xlu0 %648
    %650 = vrot.lane.b32.xlu0 %v388, 63
    %v651 = vpop.permute.xlu0 %650
    %652 = vrot.lane.b32.xlu0 %v389, 63
    %v653 = vpop.permute.xlu0 %652
    %654 = vrot.lane.b32.xlu0 %v390, 63
    %v655 = vpop.permute.xlu0 %654
    %656 = vrot.lane.b32.xlu0 %v391, 63
    %v657 = vpop.permute.xlu0 %656
    %658 = vrot.lane.b32.xlu0 %v392, 63
    %v659 = vpop.permute.xlu0 %658
    %660 = vrot.lane.b32.xlu0 %v393, 63
    %v661 = vpop.permute.xlu0 %660
    %vm662 = vcmp.lt.s32.totalorder %v411, 63
    %v663 = vsel %vm662, %v659, %v661
    %v664 = vsel %vm662, %v657, %v659
    %v665 = vsel %vm662, %v655, %v657
    %v666 = vsel %vm662, %v653, %v655
    %v667 = vsel %vm662, %v651, %v653
    %v668 = vsel %vm662, %v649, %v651
    %v669 = vsel %vm662, %v647, %v649
    %v670 = vsel %vm662, %v661, %v647
    %671 = vrot.lane.b32.xlu0 %v386, 62
    %v672 = vpop.permute.xlu0 %671
    %673 = vrot.lane.b32.xlu0 %v387, 62
    %v674 = vpop.permute.xlu0 %673
    %675 = vrot.lane.b32.xlu0 %v388, 62
    %v676 = vpop.permute.xlu0 %675
    %677 = vrot.lane.b32.xlu0 %v389, 62
    %v678 = vpop.permute.xlu0 %677
    %679 = vrot.lane.b32.xlu0 %v390, 62
    %v680 = vpop.permute.xlu0 %679
    %681 = vrot.lane.b32.xlu0 %v391, 62
    %v682 = vpop.permute.xlu0 %681
    %683 = vrot.lane.b32.xlu0 %v392, 62
    %v684 = vpop.permute.xlu0 %683
    %685 = vrot.lane.b32.xlu0 %v393, 62
    %v686 = vpop.permute.xlu0 %685
    %vm687 = vcmp.lt.s32.totalorder %v411, 62
    %v688 = vsel %vm687, %v684, %v686
    %v689 = vsel %vm687, %v682, %v684
    %v690 = vsel %vm687, %v680, %v682
    %v691 = vsel %vm687, %v678, %v680
    %v692 = vsel %vm687, %v676, %v678
    %v693 = vsel %vm687, %v674, %v676
    %v694 = vsel %vm687, %v672, %v674
    %v695 = vsel %vm687, %v686, %v672
    %696 = vrot.lane.b32.xlu0 %v386, 61
    %v697 = vpop.permute.xlu0 %696
    %698 = vrot.lane.b32.xlu0 %v387, 61
    %v699 = vpop.permute.xlu0 %698
    %700 = vrot.lane.b32.xlu0 %v388, 61
    %v701 = vpop.permute.xlu0 %700
    %702 = vrot.lane.b32.xlu0 %v389, 61
    %v703 = vpop.permute.xlu0 %702
    %704 = vrot.lane.b32.xlu0 %v390, 61
    %v705 = vpop.permute.xlu0 %704
    %706 = vrot.lane.b32.xlu0 %v391, 61
    %v707 = vpop.permute.xlu0 %706
    %708 = vrot.lane.b32.xlu0 %v392, 61
    %v709 = vpop.permute.xlu0 %708
    %710 = vrot.lane.b32.xlu0 %v393, 61
    %v711 = vpop.permute.xlu0 %710
    %vm712 = vcmp.lt.s32.totalorder %v411, 61
    %v713 = vsel %vm712, %v709, %v711
    %v714 = vsel %vm712, %v707, %v709
    %v715 = vsel %vm712, %v705, %v707
    %v716 = vsel %vm712, %v703, %v705
    %v717 = vsel %vm712, %v701, %v703
    %v718 = vsel %vm712, %v699, %v701
    %v719 = vsel %vm712, %v697, %v699
    %v720 = vsel %vm712, %v711, %v697
    %721 = vrot.lane.b32.xlu0 %v386, 60
    %v722 = vpop.permute.xlu0 %721
    %723 = vrot.lane.b32.xlu0 %v387, 60
    %v724 = vpop.permute.xlu0 %723
    %725 = vrot.lane.b32.xlu0 %v388, 60
    %v726 = vpop.permute.xlu0 %725
    %727 = vrot.lane.b32.xlu0 %v389, 60
    %v728 = vpop.permute.xlu0 %727
    %729 = vrot.lane.b32.xlu0 %v390, 60
    %v730 = vpop.permute.xlu0 %729
    %731 = vrot.lane.b32.xlu0 %v391, 60
    %v732 = vpop.permute.xlu0 %731
    %733 = vrot.lane.b32.xlu0 %v392, 60
    %v734 = vpop.permute.xlu0 %733
    %735 = vrot.lane.b32.xlu0 %v393, 60
    %v736 = vpop.permute.xlu0 %735
    %vm737 = vcmp.lt.s32.totalorder %v411, 60
    %v738 = vsel %vm737, %v734, %v736
    %v739 = vsel %vm737, %v732, %v734
    %v740 = vsel %vm737, %v730, %v732
    %v741 = vsel %vm737, %v728, %v730
    %v742 = vsel %vm737, %v726, %v728
    %v743 = vsel %vm737, %v724, %v726
    %v744 = vsel %vm737, %v722, %v724
    %v745 = vsel %vm737, %v736, %v722
    %746 = vrot.lane.b32.xlu0 %v386, 32
    %v747 = vpop.permute.xlu0 %746
    %748 = vrot.lane.b32.xlu0 %v387, 32
    %v749 = vpop.permute.xlu0 %748
    %750 = vrot.lane.b32.xlu0 %v388, 32
    %v751 = vpop.permute.xlu0 %750
    %752 = vrot.lane.b32.xlu0 %v389, 32
    %v753 = vpop.permute.xlu0 %752
    %754 = vrot.lane.b32.xlu0 %v390, 32
    %v755 = vpop.permute.xlu0 %754
    %756 = vrot.lane.b32.xlu0 %v391, 32
    %v757 = vpop.permute.xlu0 %756
    %758 = vrot.lane.b32.xlu0 %v392, 32
    %v759 = vpop.permute.xlu0 %758
    %760 = vrot.lane.b32.xlu0 %v393, 32
    %v761 = vpop.permute.xlu0 %760
    %vm762 = vcmp.lt.s32.totalorder %v411, 32
    %v763 = vsel %vm762, %v759, %v761
    %v764 = vsel %vm762, %v757, %v759
    %v765 = vsel %vm762, %v755, %v757
    %v766 = vsel %vm762, %v753, %v755
    %v767 = vsel %vm762, %v751, %v753
    %v768 = vsel %vm762, %v749, %v751
    %v769 = vsel %vm762, %v747, %v749
    %v770 = vsel %vm762, %v761, %v747
    %771 = vrot.lane.b32.xlu0 %v386, 31
    %v772 = vpop.permute.xlu0 %771
    %773 = vrot.lane.b32.xlu0 %v387, 31
    %v774 = vpop.permute.xlu0 %773
    %775 = vrot.lane.b32.xlu0 %v388, 31
    %v776 = vpop.permute.xlu0 %775
    %777 = vrot.lane.b32.xlu0 %v389, 31
    %v778 = vpop.permute.xlu0 %777
    %779 = vrot.lane.b32.xlu0 %v390, 31
    %v780 = vpop.permute.xlu0 %779
    %781 = vrot.lane.b32.xlu0 %v391, 31
    %v782 = vpop.permute.xlu0 %781
    %783 = vrot.lane.b32.xlu0 %v392, 31
    %v784 = vpop.permute.xlu0 %783
    %785 = vrot.lane.b32.xlu0 %v393, 31
    %v786 = vpop.permute.xlu0 %785
    %vm787 = vcmp.lt.s32.totalorder %v411, 31
    %v788 = vsel %vm787, %v784, %v786
    %v789 = vsel %vm787, %v782, %v784
    %v790 = vsel %vm787, %v780, %v782
    %v791 = vsel %vm787, %v778, %v780
    %v792 = vsel %vm787, %v776, %v778
    %v793 = vsel %vm787, %v774, %v776
    %v794 = vsel %vm787, %v772, %v774
    %v795 = vsel %vm787, %v786, %v772
    %796 = vrot.lane.b32.xlu0 %v386, 30
    %v797 = vpop.permute.xlu0 %796
    %798 = vrot.lane.b32.xlu0 %v387, 30
    %v799 = vpop.permute.xlu0 %798
    %800 = vrot.lane.b32.xlu0 %v388, 30
    %v801 = vpop.permute.xlu0 %800
    %802 = vrot.lane.b32.xlu0 %v389, 30
    %v803 = vpop.permute.xlu0 %802
    %804 = vrot.lane.b32.xlu0 %v390, 30
    %v805 = vpop.permute.xlu0 %804
    %806 = vrot.lane.b32.xlu0 %v391, 30
    %v807 = vpop.permute.xlu0 %806
    %808 = vrot.lane.b32.xlu0 %v392, 30
    %v809 = vpop.permute.xlu0 %808
    %810 = vrot.lane.b32.xlu0 %v393, 30
    %v811 = vpop.permute.xlu0 %810
    %vm812 = vcmp.lt.s32.totalorder %v411, 30
    %v813 = vsel %vm812, %v809, %v811
    %v814 = vsel %vm812, %v807, %v809
    %v815 = vsel %vm812, %v805, %v807
    %v816 = vsel %vm812, %v803, %v805
    %v817 = vsel %vm812, %v801, %v803
    %v818 = vsel %vm812, %v799, %v801
    %v819 = vsel %vm812, %v797, %v799
    %v820 = vsel %vm812, %v811, %v797
    %821 = vrot.lane.b32.xlu0 %v386, 29
    %v822 = vpop.permute.xlu0 %821
    %823 = vrot.lane.b32.xlu0 %v387, 29
    %v824 = vpop.permute.xlu0 %823
    %825 = vrot.lane.b32.xlu0 %v388, 29
    %v826 = vpop.permute.xlu0 %825
    %827 = vrot.lane.b32.xlu0 %v389, 29
    %v828 = vpop.permute.xlu0 %827
    %829 = vrot.lane.b32.xlu0 %v390, 29
    %v830 = vpop.permute.xlu0 %829
    %831 = vrot.lane.b32.xlu0 %v391, 29
    %v832 = vpop.permute.xlu0 %831
    %833 = vrot.lane.b32.xlu0 %v392, 29
    %v834 = vpop.permute.xlu0 %833
    %835 = vrot.lane.b32.xlu0 %v393, 29
    %v836 = vpop.permute.xlu0 %835
    %vm837 = vcmp.lt.s32.totalorder %v411, 29
    %v838 = vsel %vm837, %v834, %v836
    %v839 = vsel %vm837, %v832, %v834
    %v840 = vsel %vm837, %v830, %v832
    %v841 = vsel %vm837, %v828, %v830
    %v842 = vsel %vm837, %v826, %v828
    %v843 = vsel %vm837, %v824, %v826
    %v844 = vsel %vm837, %v822, %v824
    %v845 = vsel %vm837, %v836, %v822
    %846 = vrot.lane.b32.xlu0 %v386, 28
    %v847 = vpop.permute.xlu0 %846
    %848 = vrot.lane.b32.xlu0 %v387, 28
    %v849 = vpop.permute.xlu0 %848
    %850 = vrot.lane.b32.xlu0 %v388, 28
    %v851 = vpop.permute.xlu0 %850
    %852 = vrot.lane.b32.xlu0 %v389, 28
    %v853 = vpop.permute.xlu0 %852
    %854 = vrot.lane.b32.xlu0 %v390, 28
    %v855 = vpop.permute.xlu0 %854
    %856 = vrot.lane.b32.xlu0 %v391, 28
    %v857 = vpop.permute.xlu0 %856
    %858 = vrot.lane.b32.xlu0 %v392, 28
    %v859 = vpop.permute.xlu0 %858
    %860 = vrot.lane.b32.xlu0 %v393, 28
    %v861 = vpop.permute.xlu0 %860
    %vm862 = vcmp.lt.s32.totalorder %v411, 28
    %v863 = vsel %vm862, %v859, %v861
    %v864 = vsel %vm862, %v857, %v859
    %v865 = vsel %vm862, %v855, %v857
    %v866 = vsel %vm862, %v853, %v855
    %v867 = vsel %vm862, %v851, %v853
    %v868 = vsel %vm862, %v849, %v851
    %v869 = vsel %vm862, %v847, %v849
    %v870 = vsel %vm862, %v861, %v847
    %s871 = sld [smem:[#allocation7]]
    %v872 = vstv %s871
    %v873 = vmul.f32 %v386, %v872
    %v874 = vmul.f32 %v387, %v872
    %v875 = vmul.f32 %v388, %v872
    %v876 = vmul.f32 %v389, %v872
    %v877 = vmul.f32 %v390, %v872
    %v878 = vmul.f32 %v391, %v872
    %v879 = vmul.f32 %v392, %v872
    %v880 = vmul.f32 %v393, %v872
    %s881 = sld [smem:[#allocation7 + $0x1]]
    %v882 = vstv %s881
    %v883 = vmul.f32 %v419, %v882
    %v884 = vmul.f32 %v418, %v882
    %v885 = vmul.f32 %v417, %v882
    %v886 = vmul.f32 %v416, %v882
    %v887 = vmul.f32 %v415, %v882
    %v888 = vmul.f32 %v414, %v882
    %v889 = vmul.f32 %v413, %v882
    %v890 = vmul.f32 %v420, %v882
    %s891 = sld [smem:[#allocation7 + $0x2]]
    %v892 = vstv %s891
    %v893 = vmul.f32 %v444, %v892
    %v894 = vmul.f32 %v443, %v892
    %v895 = vmul.f32 %v442, %v892
    %v896 = vmul.f32 %v441, %v892
    %v897 = vmul.f32 %v440, %v892
    %v898 = vmul.f32 %v439, %v892
    %v899 = vmul.f32 %v438, %v892
    %v900 = vmul.f32 %v445, %v892
    %s901 = sld [smem:[#allocation7 + $0x3]]
    %v902 = vstv %s901
    %v903 = vmul.f32 %v469, %v902
    %v904 = vmul.f32 %v468, %v902
    %v905 = vmul.f32 %v467, %v902
    %v906 = vmul.f32 %v466, %v902
    %v907 = vmul.f32 %v465, %v902
    %v908 = vmul.f32 %v464, %v902
    %v909 = vmul.f32 %v463, %v902
    %v910 = vmul.f32 %v470, %v902
    %s911 = sld [smem:[#allocation7 + $0x4]]
    %v912 = vstv %s911
    %v913 = vmul.f32 %v494, %v912
    %v914 = vmul.f32 %v493, %v912
    %v915 = vmul.f32 %v492, %v912
    %v916 = vmul.f32 %v491, %v912
    %v917 = vmul.f32 %v490, %v912
    %v918 = vmul.f32 %v489, %v912
    %v919 = vmul.f32 %v488, %v912
    %v920 = vmul.f32 %v495, %v912
    %v921 = vadd.f32 %v873, %v913
    %v922 = vadd.f32 %v874, %v914
    %v923 = vadd.f32 %v875, %v915
    %v924 = vadd.f32 %v876, %v916
    %v925 = vadd.f32 %v877, %v917
    %v926 = vadd.f32 %v878, %v918
    %v927 = vadd.f32 %v879, %v919
    %v928 = vadd.f32 %v880, %v920
    %s929 = sld [smem:[#allocation7 + $0x5]]
    %v930 = vstv %s929
    %v931 = vmul.f32 %v519, %v930
    %v932 = vmul.f32 %v518, %v930
    %v933 = vmul.f32 %v517, %v930
    %v934 = vmul.f32 %v516, %v930
    %v935 = vmul.f32 %v515, %v930
    %v936 = vmul.f32 %v514, %v930
    %v937 = vmul.f32 %v513, %v930
    %v938 = vmul.f32 %v520, %v930
    %v939 = vadd.f32 %v883, %v931
    %v940 = vadd.f32 %v884, %v932
    %v941 = vadd.f32 %v885, %v933
    %v942 = vadd.f32 %v886, %v934
    %v943 = vadd.f32 %v887, %v935
    %v944 = vadd.f32 %v888, %v936
    %v945 = vadd.f32 %v889, %v937
    %v946 = vadd.f32 %v890, %v938
    %s947 = sld [smem:[#allocation7 + $0x6]]
    %v948 = vstv %s947
    %v949 = vmul.f32 %v544, %v948
    %v950 = vmul.f32 %v543, %v948
    %v951 = vmul.f32 %v542, %v948
    %v952 = vmul.f32 %v541, %v948
    %v953 = vmul.f32 %v540, %v948
    %v954 = vmul.f32 %v539, %v948
    %v955 = vmul.f32 %v538, %v948
    %v956 = vmul.f32 %v545, %v948
    %v957 = vadd.f32 %v893, %v949
    %v958 = vadd.f32 %v894, %v950
    %v959 = vadd.f32 %v895, %v951
    %v960 = vadd.f32 %v896, %v952
    %v961 = vadd.f32 %v897, %v953
    %v962 = vadd.f32 %v898, %v954
    %v963 = vadd.f32 %v899, %v955
    %v964 = vadd.f32 %v900, %v956
    %s965 = sld [smem:[#allocation7 + $0x7]]
    %v966 = vstv %s965
    %v967 = vmul.f32 %v569, %v966
    %v968 = vmul.f32 %v568, %v966
    %v969 = vmul.f32 %v567, %v966
    %v970 = vmul.f32 %v566, %v966
    %v971 = vmul.f32 %v565, %v966
    %v972 = vmul.f32 %v564, %v966
    %v973 = vmul.f32 %v563, %v966
    %v974 = vmul.f32 %v570, %v966
    %v975 = vadd.f32 %v903, %v967
    %v976 = vadd.f32 %v904, %v968
    %v977 = vadd.f32 %v905, %v969
    %v978 = vadd.f32 %v906, %v970
    %v979 = vadd.f32 %v907, %v971
    %v980 = vadd.f32 %v908, %v972
    %v981 = vadd.f32 %v909, %v973
    %v982 = vadd.f32 %v910, %v974
    %s983 = sld [smem:[#allocation7 + $0x8]]
    %v984 = vstv %s983
    %v985 = vmul.f32 %v594, %v984
    %v986 = vmul.f32 %v593, %v984
    %v987 = vmul.f32 %v592, %v984
    %v988 = vmul.f32 %v591, %v984
    %v989 = vmul.f32 %v590, %v984
    %v990 = vmul.f32 %v589, %v984
    %v991 = vmul.f32 %v588, %v984
    %v992 = vmul.f32 %v595, %v984
    %v993 = vadd.f32 %v921, %v985
    %v994 = vadd.f32 %v922, %v986
    %v995 = vadd.f32 %v923, %v987
    %v996 = vadd.f32 %v924, %v988
    %v997 = vadd.f32 %v925, %v989
    %v998 = vadd.f32 %v926, %v990
    %v999 = vadd.f32 %v927, %v991
    %v1000 = vadd.f32 %v928, %v992
    %s1001 = sld [smem:[#allocation7 + $0x9]]
    %v1002 = vstv %s1001
    %v1003 = vmul.f32 %v619, %v1002
    %v1004 = vmul.f32 %v618, %v1002
    %v1005 = vmul.f32 %v617, %v1002
    %v1006 = vmul.f32 %v616, %v1002
    %v1007 = vmul.f32 %v615, %v1002
    %v1008 = vmul.f32 %v614, %v1002
    %v1009 = vmul.f32 %v613, %v1002
    %v1010 = vmul.f32 %v620, %v1002
    %v1011 = vadd.f32 %v939, %v1003
    %v1012 = vadd.f32 %v940, %v1004
    %v1013 = vadd.f32 %v941, %v1005
    %v1014 = vadd.f32 %v942, %v1006
    %v1015 = vadd.f32 %v943, %v1007
    %v1016 = vadd.f32 %v944, %v1008
    %v1017 = vadd.f32 %v945, %v1009
    %v1018 = vadd.f32 %v946, %v1010
    %s1019 = sld [smem:[#allocation7 + $0xa]]
    %v1020 = vstv %s1019
    %v1021 = vmul.f32 %v644, %v1020
    %v1022 = vmul.f32 %v643, %v1020
    %v1023 = vmul.f32 %v642, %v1020
    %v1024 = vmul.f32 %v641, %v1020
    %v1025 = vmul.f32 %v640, %v1020
    %v1026 = vmul.f32 %v639, %v1020
    %v1027 = vmul.f32 %v638, %v1020
    %v1028 = vmul.f32 %v645, %v1020
    %v1029 = vadd.f32 %v957, %v1021
    %v1030 = vadd.f32 %v958, %v1022
    %v1031 = vadd.f32 %v959, %v1023
    %v1032 = vadd.f32 %v960, %v1024
    %v1033 = vadd.f32 %v961, %v1025
    %v1034 = vadd.f32 %v962, %v1026
    %v1035 = vadd.f32 %v963, %v1027
    %v1036 = vadd.f32 %v964, %v1028
    %s1037 = sld [smem:[#allocation7 + $0xb]]
    %v1038 = vstv %s1037
    %v1039 = vmul.f32 %v669, %v1038
    %v1040 = vmul.f32 %v668, %v1038
    %v1041 = vmul.f32 %v667, %v1038
    %v1042 = vmul.f32 %v666, %v1038
    %v1043 = vmul.f32 %v665, %v1038
    %v1044 = vmul.f32 %v664, %v1038
    %v1045 = vmul.f32 %v663, %v1038
    %v1046 = vmul.f32 %v670, %v1038
    %v1047 = vadd.f32 %v975, %v1039
    %v1048 = vadd.f32 %v976, %v1040
    %v1049 = vadd.f32 %v977, %v1041
    %v1050 = vadd.f32 %v978, %v1042
    %v1051 = vadd.f32 %v979, %v1043
    %v1052 = vadd.f32 %v980, %v1044
    %v1053 = vadd.f32 %v981, %v1045
    %v1054 = vadd.f32 %v982, %v1046
    %s1055 = sld [smem:[#allocation7 + $0xc]]
    %v1056 = vstv %s1055
    %v1057 = vmul.f32 %v694, %v1056
    %v1058 = vmul.f32 %v693, %v1056
    %v1059 = vmul.f32 %v692, %v1056
    %v1060 = vmul.f32 %v691, %v1056
    %v1061 = vmul.f32 %v690, %v1056
    %v1062 = vmul.f32 %v689, %v1056
    %v1063 = vmul.f32 %v688, %v1056
    %v1064 = vmul.f32 %v695, %v1056
    %v1065 = vadd.f32 %v993, %v1057
    %v1066 = vadd.f32 %v994, %v1058
    %v1067 = vadd.f32 %v995, %v1059
    %v1068 = vadd.f32 %v996, %v1060
    %v1069 = vadd.f32 %v997, %v1061
    %v1070 = vadd.f32 %v998, %v1062
    %v1071 = vadd.f32 %v999, %v1063
    %v1072 = vadd.f32 %v1000, %v1064
    %s1073 = sld [smem:[#allocation7 + $0xd]]
    %v1074 = vstv %s1073
    %v1075 = vmul.f32 %v719, %v1074
    %v1076 = vmul.f32 %v718, %v1074
    %v1077 = vmul.f32 %v717, %v1074
    %v1078 = vmul.f32 %v716, %v1074
    %v1079 = vmul.f32 %v715, %v1074
    %v1080 = vmul.f32 %v714, %v1074
    %v1081 = vmul.f32 %v713, %v1074
    %v1082 = vmul.f32 %v720, %v1074
    %v1083 = vadd.f32 %v1011, %v1075
    %v1084 = vadd.f32 %v1012, %v1076
    %v1085 = vadd.f32 %v1013, %v1077
    %v1086 = vadd.f32 %v1014, %v1078
    %v1087 = vadd.f32 %v1015, %v1079
    %v1088 = vadd.f32 %v1016, %v1080
    %v1089 = vadd.f32 %v1017, %v1081
    %v1090 = vadd.f32 %v1018, %v1082
    %s1091 = sld [smem:[#allocation7 + $0xe]]
    %v1092 = vstv %s1091
    %v1093 = vmul.f32 %v744, %v1092
    %v1094 = vmul.f32 %v743, %v1092
    %v1095 = vmul.f32 %v742, %v1092
    %v1096 = vmul.f32 %v741, %v1092
    %v1097 = vmul.f32 %v740, %v1092
    %v1098 = vmul.f32 %v739, %v1092
    %v1099 = vmul.f32 %v738, %v1092
    %v1100 = vmul.f32 %v745, %v1092
    %v1101 = vadd.f32 %v1029, %v1093
    %v1102 = vadd.f32 %v1030, %v1094
    %v1103 = vadd.f32 %v1031, %v1095
    %v1104 = vadd.f32 %v1032, %v1096
    %v1105 = vadd.f32 %v1033, %v1097
    %v1106 = vadd.f32 %v1034, %v1098
    %v1107 = vadd.f32 %v1035, %v1099
    %v1108 = vadd.f32 %v1036, %v1100
    %s1109 = sld [smem:[#allocation7 + $0xf]]
    %v1110 = vstv %s1109
    %v1111 = vmul.f32 %v769, %v1110
    %v1112 = vmul.f32 %v768, %v1110
    %v1113 = vmul.f32 %v767, %v1110
    %v1114 = vmul.f32 %v766, %v1110
    %v1115 = vmul.f32 %v765, %v1110
    %v1116 = vmul.f32 %v764, %v1110
    %v1117 = vmul.f32 %v763, %v1110
    %v1118 = vmul.f32 %v770, %v1110
    %v1119 = vadd.f32 %v1047, %v1111
    %v1120 = vadd.f32 %v1048, %v1112
    %v1121 = vadd.f32 %v1049, %v1113
    %v1122 = vadd.f32 %v1050, %v1114
    %v1123 = vadd.f32 %v1051, %v1115
    %v1124 = vadd.f32 %v1052, %v1116
    %v1125 = vadd.f32 %v1053, %v1117
    %v1126 = vadd.f32 %v1054, %v1118
    %s1127 = sld [smem:[#allocation7 + $0x10]]
    %v1128 = vstv %s1127
    %v1129 = vmul.f32 %v794, %v1128
    %v1130 = vmul.f32 %v793, %v1128
    %v1131 = vmul.f32 %v792, %v1128
    %v1132 = vmul.f32 %v791, %v1128
    %v1133 = vmul.f32 %v790, %v1128
    %v1134 = vmul.f32 %v789, %v1128
    %v1135 = vmul.f32 %v788, %v1128
    %v1136 = vmul.f32 %v795, %v1128
    %v1137 = vadd.f32 %v1065, %v1129
    %v1138 = vadd.f32 %v1066, %v1130
    %v1139 = vadd.f32 %v1067, %v1131
    %v1140 = vadd.f32 %v1068, %v1132
    %v1141 = vadd.f32 %v1069, %v1133
    %v1142 = vadd.f32 %v1070, %v1134
    %v1143 = vadd.f32 %v1071, %v1135
    %v1144 = vadd.f32 %v1072, %v1136
    %s1145 = sld [smem:[#allocation7 + $0x11]]
    %v1146 = vstv %s1145
    %v1147 = vmul.f32 %v819, %v1146
    %v1148 = vmul.f32 %v818, %v1146
    %v1149 = vmul.f32 %v817, %v1146
    %v1150 = vmul.f32 %v816, %v1146
    %v1151 = vmul.f32 %v815, %v1146
    %v1152 = vmul.f32 %v814, %v1146
    %v1153 = vmul.f32 %v813, %v1146
    %v1154 = vmul.f32 %v820, %v1146
    %v1155 = vadd.f32 %v1083, %v1147
    %v1156 = vadd.f32 %v1084, %v1148
    %v1157 = vadd.f32 %v1085, %v1149
    %v1158 = vadd.f32 %v1086, %v1150
    %v1159 = vadd.f32 %v1087, %v1151
    %v1160 = vadd.f32 %v1088, %v1152
    %v1161 = vadd.f32 %v1089, %v1153
    %v1162 = vadd.f32 %v1090, %v1154
    %s1163 = sld [smem:[#allocation7 + $0x12]]
    %v1164 = vstv %s1163
    %v1165 = vmul.f32 %v844, %v1164
    %v1166 = vmul.f32 %v843, %v1164
    %v1167 = vmul.f32 %v842, %v1164
    %v1168 = vmul.f32 %v841, %v1164
    %v1169 = vmul.f32 %v840, %v1164
    %v1170 = vmul.f32 %v839, %v1164
    %v1171 = vmul.f32 %v838, %v1164
    %v1172 = vmul.f32 %v845, %v1164
    %v1173 = vadd.f32 %v1101, %v1165
    %v1174 = vadd.f32 %v1102, %v1166
    %v1175 = vadd.f32 %v1103, %v1167
    %v1176 = vadd.f32 %v1104, %v1168
    %v1177 = vadd.f32 %v1105, %v1169
    %v1178 = vadd.f32 %v1106, %v1170
    %v1179 = vadd.f32 %v1107, %v1171
    %v1180 = vadd.f32 %v1108, %v1172
    %s1181 = sld [smem:[#allocation7 + $0x13]]
    %v1182 = vstv %s1181
    %v1183 = vmul.f32 %v869, %v1182
    %v1184 = vmul.f32 %v868, %v1182
    %v1185 = vmul.f32 %v867, %v1182
    %v1186 = vmul.f32 %v866, %v1182
    %v1187 = vmul.f32 %v865, %v1182
    %v1188 = vmul.f32 %v864, %v1182
    %v1189 = vmul.f32 %v863, %v1182
    %v1190 = vmul.f32 %v870, %v1182
    %v1191 = vadd.f32 %v1119, %v1183
    %v1192 = vadd.f32 %v1120, %v1184
    %v1193 = vadd.f32 %v1121, %v1185
    %v1194 = vadd.f32 %v1122, %v1186
    %v1195 = vadd.f32 %v1123, %v1187
    %v1196 = vadd.f32 %v1124, %v1188
    %v1197 = vadd.f32 %v1125, %v1189
    %v1198 = vadd.f32 %v1126, %v1190
    %s1199 = sld [smem:[#allocation7 + $0x14]]
    %v1200 = vstv %s1199
    %v1201 = vmul.f32 %v387, %v1200
    %v1202 = vmul.f32 %v388, %v1200
    %v1203 = vmul.f32 %v389, %v1200
    %v1204 = vmul.f32 %v390, %v1200
    %v1205 = vmul.f32 %v391, %v1200
    %v1206 = vmul.f32 %v392, %v1200
    %v1207 = vmul.f32 %v393, %v1200
    %v1208 = vmul.f32 %v386, %v1200
    %v1209 = vadd.f32 %v1137, %v1201
    %v1210 = vadd.f32 %v1138, %v1202
    %v1211 = vadd.f32 %v1139, %v1203
    %v1212 = vadd.f32 %v1140, %v1204
    %v1213 = vadd.f32 %v1141, %v1205
    %v1214 = vadd.f32 %v1142, %v1206
    %v1215 = vadd.f32 %v1143, %v1207
    %v1216 = vadd.f32 %v1144, %v1208
    %s1217 = sld [smem:[#allocation7 + $0x15]]
    %v1218 = vstv %s1217
    %v1219 = vmul.f32 %v418, %v1218
    %v1220 = vmul.f32 %v417, %v1218
    %v1221 = vmul.f32 %v416, %v1218
    %v1222 = vmul.f32 %v415, %v1218
    %v1223 = vmul.f32 %v414, %v1218
    %v1224 = vmul.f32 %v413, %v1218
    %v1225 = vmul.f32 %v420, %v1218
    %v1226 = vmul.f32 %v419, %v1218
    %v1227 = vadd.f32 %v1155, %v1219
    %v1228 = vadd.f32 %v1156, %v1220
    %v1229 = vadd.f32 %v1157, %v1221
    %v1230 = vadd.f32 %v1158, %v1222
    %v1231 = vadd.f32 %v1159, %v1223
    %v1232 = vadd.f32 %v1160, %v1224
    %v1233 = vadd.f32 %v1161, %v1225
    %v1234 = vadd.f32 %v1162, %v1226
    %s1235 = sld [smem:[#allocation7 + $0x16]]
    %v1236 = vstv %s1235
    %v1237 = vmul.f32 %v443, %v1236
    %v1238 = vmul.f32 %v442, %v1236
    %v1239 = vmul.f32 %v441, %v1236
    %v1240 = vmul.f32 %v440, %v1236
    %v1241 = vmul.f32 %v439, %v1236
    %v1242 = vmul.f32 %v438, %v1236
    %v1243 = vmul.f32 %v445, %v1236
    %v1244 = vmul.f32 %v444, %v1236
    %v1245 = vadd.f32 %v1173, %v1237
    %v1246 = vadd.f32 %v1174, %v1238
    %v1247 = vadd.f32 %v1175, %v1239
    %v1248 = vadd.f32 %v1176, %v1240
    %v1249 = vadd.f32 %v1177, %v1241
    %v1250 = vadd.f32 %v1178, %v1242
    %v1251 = vadd.f32 %v1179, %v1243
    %v1252 = vadd.f32 %v1180, %v1244
    %s1253 = sld [smem:[#allocation7 + $0x17]]
    %v1254 = vstv %s1253
    %v1255 = vmul.f32 %v468, %v1254
    %v1256 = vmul.f32 %v467, %v1254
    %v1257 = vmul.f32 %v466, %v1254
    %v1258 = vmul.f32 %v465, %v1254
    %v1259 = vmul.f32 %v464, %v1254
    %v1260 = vmul.f32 %v463, %v1254
    %v1261 = vmul.f32 %v470, %v1254
    %v1262 = vmul.f32 %v469, %v1254
    %v1263 = vadd.f32 %v1191, %v1255
    %v1264 = vadd.f32 %v1192, %v1256
    %v1265 = vadd.f32 %v1193, %v1257
    %v1266 = vadd.f32 %v1194, %v1258
    %v1267 = vadd.f32 %v1195, %v1259
    %v1268 = vadd.f32 %v1196, %v1260
    %v1269 = vadd.f32 %v1197, %v1261
    %v1270 = vadd.f32 %v1198, %v1262
    %s1271 = sld [smem:[#allocation7 + $0x18]]
    %v1272 = vstv %s1271
    %v1273 = vmul.f32 %v493, %v1272
    %v1274 = vmul.f32 %v492, %v1272
    %v1275 = vmul.f32 %v491, %v1272
    %v1276 = vmul.f32 %v490, %v1272
    %v1277 = vmul.f32 %v489, %v1272
    %v1278 = vmul.f32 %v488, %v1272
    %v1279 = vmul.f32 %v495, %v1272
    %v1280 = vmul.f32 %v494, %v1272
    %v1281 = vadd.f32 %v1209, %v1273
    %v1282 = vadd.f32 %v1210, %v1274
    %v1283 = vadd.f32 %v1211, %v1275
    %v1284 = vadd.f32 %v1212, %v1276
    %v1285 = vadd.f32 %v1213, %v1277
    %v1286 = vadd.f32 %v1214, %v1278
    %v1287 = vadd.f32 %v1215, %v1279
    %v1288 = vadd.f32 %v1216, %v1280
    %v1289 = vadd.f32 %v1281, %v1227
    %v1290 = vadd.f32 %v1282, %v1228
    %v1291 = vadd.f32 %v1283, %v1229
    %v1292 = vadd.f32 %v1284, %v1230
    %v1293 = vadd.f32 %v1285, %v1231
    %v1294 = vadd.f32 %v1286, %v1232
    %v1295 = vadd.f32 %v1287, %v1233
    %v1296 = vadd.f32 %v1288, %v1234
    %v1297 = vadd.f32 %v1289, %v1245
    %v1298 = vadd.f32 %v1290, %v1246
    %v1299 = vadd.f32 %v1291, %v1247
    %v1300 = vadd.f32 %v1292, %v1248
    %v1301 = vadd.f32 %v1293, %v1249
    %v1302 = vadd.f32 %v1294, %v1250
    %v1303 = vadd.f32 %v1295, %v1251
    %v1304 = vadd.f32 %v1296, %v1252
    %v1305 = vadd.f32 %v1297, %v1263
    %v1306 = vadd.f32 %v1298, %v1264
    %v1307 = vadd.f32 %v1299, %v1265
    %v1308 = vadd.f32 %v1300, %v1266
    %v1309 = vadd.f32 %v1301, %v1267
    %v1310 = vadd.f32 %v1302, %v1268
    %v1311 = vadd.f32 %v1303, %v1269
    %v1312 = vadd.f32 %v1304, %v1270
    %s1313 = sld [smem:[#allocation2]]
    %v1314 = vstv %s1313
    %v1315 = vadd.f32 %v1305, %v1314
    %v1316 = vadd.f32 %v1306, %v1314
    %v1317 = vadd.f32 %v1307, %v1314
    %v1318 = vadd.f32 %v1308, %v1314
    %v1319 = vadd.f32 %v1309, %v1314
    %v1320 = vadd.f32 %v1310, %v1314
    %v1321 = vadd.f32 %v1311, %v1314
    %v1322 = vadd.f32 %v1312, %v1314
    %v1323 = vmax.f32 %v1315, 0.0
    %v1324 = vmax.f32 %v1316, 0.0
    %v1325 = vmax.f32 %v1317, 0.0
    %v1326 = vmax.f32 %v1318, 0.0
    %v1327 = vmax.f32 %v1319, 0.0
    %v1328 = vmax.f32 %v1320, 0.0
    %v1329 = vmax.f32 %v1321, 0.0
    %v1330 = vmax.f32 %v1322, 0.0
    %v1339 = vcombine.low %v1323, %v1324
    %v1340 = vcombine.low %v1325, %v1326
    %v1342 = vunpack.c.l.s4 1983009808
    %v1343 = vunpack.c.0.s8 %v1342
    %v1344 = vlaneseq
    %v1345 = vshrl.u32 %v1344, 7
    %v1346 = vsub.s32 %v1343, %v1345
    %v1347 = vrot.slane %v1339, %v1346
    %v1349 = vunpack.c.l.s4 1983009808
    %v1350 = vunpack.c.0.s8 %v1349
    %v1351 = vlaneseq
    %v1352 = vshrl.u32 %v1351, 7
    %v1353 = vsub.s32 %v1350, %v1352
    %v1354 = vrot.slane %v1340, %v1353
    %v1355 = vcombine.low %v1347, %v1354
    %v1356 = vcombine.low %v1327, %v1328
    %v1357 = vcombine.low %v1329, %v1330
    %v1359 = vunpack.c.l.s4 1983009808
    %v1360 = vunpack.c.0.s8 %v1359
    %v1361 = vlaneseq
    %v1362 = vshrl.u32 %v1361, 7
    %v1363 = vsub.s32 %v1360, %v1362
    %v1364 = vrot.slane %v1356, %v1363
    %v1366 = vunpack.c.l.s4 1983009808
    %v1367 = vunpack.c.0.s8 %v1366
    %v1368 = vlaneseq
    %v1369 = vshrl.u32 %v1368, 7
    %v1370 = vsub.s32 %v1367, %v1369
    %v1371 = vrot.slane %v1357, %v1370
    %v1372 = vcombine.low %v1364, %v1371
    %1375 = vst [vmem:[#allocation8] sm:$0xff] %v1355
    %1376 = vst [vmem:[#allocation8 + $0x8] sm:$0xff] %v1372
    // Predicated region
    $region30: #{tpu_custom_call.1} parent=1 // pred_check
      _
    $region31: #{tpu_custom_call.1} parent=1 // pred_check_branch
      %1378 = sbr.rel (0) target = $region33
    $region32: #{tpu_custom_call.1} parent=1 // pred_region
      %s1380 = ssub.s32 256, 256
      %1381 = vsyncadd [#allocation5], %s1380
      %s1383 = sshll.u32 [#allocation8], 4
      %s1384 = int_to_ptr.vmem [resolvable:$true] %s1383
      %1386 = dma.vmem_to_hbm [thread:$0]  %s1384, 256, %s5, [#allocation5]
    $region33: #{tpu_custom_call.1} parent=1 // pred_fallthru
      _
    // Predicated region
    $region34: #{tpu_custom_call.1} parent=1 // pred_check
      _
    $region35: #{tpu_custom_call.1} parent=1 // pred_check_branch
      %1388 = sbr.rel (0) target = $region37
    $region36: #{tpu_custom_call.1} parent=1 // pred_region
      %1389 = dma.done [#allocation5], 256
    $region37: #{tpu_custom_call.1} parent=1 // pred_fallthru
      _
    %1390 = vsyncpa [#allocation4], 1
    %1391 = vsyncpa [#allocation5], 1
    %1392 = vsyncpa [#allocation6], 1

</llo_original>
